<compile_context>
chip_gen: v5e
topology: v5e:2x2
jax: 0.10.0
libtpu: 0.0.40
codegen_flags: <defaults>
</compile_context>

<pallas_src>
import numpy as np
import jax
import jax.numpy as jnp
from jax import lax
from jax.experimental import pallas as pl
from jax.experimental.pallas import tpu as pltpu

# encoder second-conv configs: (kernel, dilation); all use stride=2, padding=1
ENC_CFGS = [(3, 4), (5, 2), (7, 1)]
BN_EPS = 1e-5
CPAD = 128      # lane-dense padded class dimension for the head output


# ------------------------------ host-side prep ------------------------------

def _conv_out_len(L, k, stride, pad, dil):
    return (L + 2 * pad - dil * (k - 1) - 1) // stride + 1


def _selection_matrices(B, L_in, L_out, k, stride, pad, dil):
    """(k, B*L_out, B*L_in) 0/1 row-selection matrices, one per conv tap.

    Row (b, t) of tap j picks input row (b, stride*t + j*dil - pad); rows that
    fall into the zero padding are all-zero (padding contributes nothing)."""
    S = np.zeros((k, B * L_out, B * L_in), np.float32)
    for j in range(k):
        for b in range(B):
            for t in range(L_out):
                p = stride * t + j * dil - pad
                if 0 <= p < L_in:
                    S[j, b * L_out + t, b * L_in + p] = 1.0
    return jnp.asarray(S)


def _fold_bn(bias, gamma, beta, mean, var, eps=BN_EPS):
    scale = gamma / jnp.sqrt(var + eps)
    shift = (bias - mean) * scale + beta
    return scale, shift


def _prepare_fused_args(params, B, L):
    """Build all constant operands of the fused kernel (weights reshaped to
    channels-last tap matrices, BN folded, selection matrices, padded head)."""
    encs = params["encoders"]
    E = len(encs)
    H = encs[0]["conv1"][0].shape[0]
    n_class = params["w_head"].shape[0]

    # --- conv1: identical geometry (k=3, s=1, p=1, d=1) for all 3 encoders ->
    #     batch them as one wide RHS of shape (3, Cin, E*H).
    S1 = _selection_matrices(B, L, L, 3, 1, 1, 1)                        # (3, BL, BL)
    W1 = jnp.concatenate(
        [jnp.transpose(e["conv1"][0], (2, 1, 0)) for e in encs], axis=2  # (3, Cin, E*H)
    ).astype(jnp.float32)
    sc1_l, sh1_l = [], []
    for e in encs:
        s, sh = _fold_bn(e["conv1"][1], *e["bn1"])
        sc1_l.append(s)
        sh1_l.append(sh)
    sc1 = jnp.concatenate(sc1_l).reshape(1, E * H).astype(jnp.float32)
    sh1 = jnp.concatenate(sh1_l).reshape(1, E * H).astype(jnp.float32)

    # --- conv2 per encoder: selection matrices + tap weights with the
    #     "take encoder e's H channels of h" slice folded in as zero rows.
    enc_args, enc_meta = [], []
    for e_idx, e in enumerate(encs):
        w2, b2 = e["conv2"]
        k = w2.shape[2]
        dil = e["dilation2"]
        L_out = _conv_out_len(L, k, 2, 1, dil)
        S2 = _selection_matrices(B, L, L_out, k, 2, 1, dil)              # (k, B*Lo, B*L)
        W2 = jnp.zeros((k, E * H, H), jnp.float32)
        W2 = W2.at[:, e_idx * H:(e_idx + 1) * H, :].set(
            jnp.transpose(w2, (2, 1, 0)).astype(jnp.float32))            # (k, E*H, H)
        s2, sh2 = _fold_bn(b2, *e["bn2"])
        enc_args += [S2, W2,
                     s2.reshape(1, H).astype(jnp.float32),
                     sh2.reshape(1, H).astype(jnp.float32)]
        enc_meta.append((k, L_out))

    # --- CSRA head: L2-normalised (eps-guarded) class weights, zero-padded
    #     to a lane-dense 128-wide slab.
    w_head = params["w_head"].astype(jnp.float32)                        # (C, H)
    nrm = jnp.sqrt(jnp.sum(w_head * w_head, axis=1, keepdims=True)) + 1e-12
    Wh = jnp.zeros((H, CPAD), jnp.float32).at[:, :n_class].set((w_head / nrm).T)

    args = [S1, W1, sc1, sh1] + enc_args + [Wh]
    return args, enc_meta, E, H, n_class


# ------------------------------ fused forward -------------------------------

def forward(src, params):
    B, C_in, L = src.shape
    args, enc_meta, E, H, n_class = _prepare_fused_args(params, B, L)
    T_total = sum(Lo for _, Lo in enc_meta)
    inv_T = 1.0 / T_total

    # channels-last (B*L, Cin) activation layout for the whole kernel
    src2d = jnp.transpose(src, (0, 2, 1)).reshape(B * L, C_in).astype(jnp.float32)

    def kernel(src_ref, s1_ref, w1_ref, sc1_ref, sh1_ref, *rest):
        enc_refs = rest[:4 * E]
        wh_ref = rest[4 * E]
        out_ref = rest[4 * E + 1]

        x = src_ref[...]                                               # (B*L, Cin)

        # stage 1: three conv1 layers as one wide tap-summed matmul, with the
        # folded-BN + ReLU epilogue fused.  h stays resident in VMEM/vregs.
        h = jnp.zeros((B * L, E * H), jnp.float32)
        for j in range(3):
            shifted = jnp.dot(s1_ref[j], x, preferred_element_type=jnp.float32)
            h = h + jnp.dot(shifted, w1_ref[j], preferred_element_type=jnp.float32)
        h = jnp.maximum(h * sc1_ref[...] + sh1_ref[...], 0.0)          # (B*L, E*H)

        # stage 2+3: per-encoder dilated/strided conv2 (+BN+ReLU), then the
        # CSRA head matmul; mean/max over time are accumulated on the fly so
        # only the (B, 128) result ever leaves VMEM.
        sum_rows = [jnp.zeros((1, CPAD), jnp.float32) for _ in range(B)]
        max_rows = [jnp.full((1, CPAD), -jnp.inf, jnp.float32) for _ in range(B)]
        for e, (k_e, Lo) in enumerate(enc_meta):
            s2_ref, w2_ref, sc2_ref, sh2_ref = enc_refs[4 * e:4 * (e + 1)]
            y = jnp.zeros((B * Lo, H), jnp.float32)
            for j in range(k_e):
                shifted = jnp.dot(s2_ref[j], h, preferred_element_type=jnp.float32)
                y = y + jnp.dot(shifted, w2_ref[j], preferred_element_type=jnp.float32)
            y = jnp.maximum(y * sc2_ref[...] + sh2_ref[...], 0.0)      # (B*Lo, H)
            score = jnp.dot(y, wh_ref[...],
                            preferred_element_type=jnp.float32)        # (B*Lo, 128)
            for b in range(B):
                blk = score[b * Lo:(b + 1) * Lo, :]
                sum_rows[b] = sum_rows[b] + jnp.sum(blk, axis=0, keepdims=True)
                max_rows[b] = jnp.maximum(max_rows[b],
                                          jnp.max(blk, axis=0, keepdims=True))

        out_ref[...] = (jnp.concatenate(sum_rows, axis=0) * inv_T
                        + jnp.concatenate(max_rows, axis=0))

    def full_spec(shape):
        nd = len(shape)
        return pl.BlockSpec(tuple(shape), lambda i, _nd=nd: (0,) * _nd)

    all_inputs = [src2d] + args
    out_pad = pl.pallas_call(
        kernel,
        out_shape=jax.ShapeDtypeStruct((B, CPAD), jnp.float32),
        grid=(1,),
        in_specs=[full_spec(a.shape) for a in all_inputs],
        out_specs=pl.BlockSpec((B, CPAD), lambda i: (0, 0)),
        compiler_params=pltpu.CompilerParams(dimension_semantics=("arbitrary",)),
    )(*all_inputs)

    return out_pad[:, :n_class]


# ------------------------------ reference (JAX) -----------------------------

def _ref_conv_bn_relu(x, w, b, gamma, beta, mean, var, *, stride, padding,
                      dilation, eps=BN_EPS):
    y = lax.conv_general_dilated(
        x, w, window_strides=(stride,), padding=[(padding, padding)],
        rhs_dilation=(dilation,), dimension_numbers=("NCH", "OIH", "NCH"))
    y = y + b[None, :, None]
    y = ((y - mean[None, :, None]) / jnp.sqrt(var[None, :, None] + eps)
         * gamma[None, :, None] + beta[None, :, None])
    return jnp.maximum(y, 0.0)


def ref_forward(src, params):
    feats = []
    for enc in params["encoders"]:
        w1, b1 = enc["conv1"]
        h = _ref_conv_bn_relu(src, w1, b1, *enc["bn1"],
                              stride=1, padding=1, dilation=1)
        w2, b2 = enc["conv2"]
        h = _ref_conv_bn_relu(h, w2, b2, *enc["bn2"],
                              stride=2, padding=1, dilation=enc["dilation2"])
        feats.append(h)
    features = jnp.concatenate(feats, axis=2)               # (B, H, T)
    w = params["w_head"]                                     # (C, H)
    score = jnp.einsum("bht,ch->bct", features, w)
    score = score / jnp.linalg.norm(w, axis=1)[None, :, None]
    return jnp.mean(score, axis=2) + jnp.max(score, axis=2)


# ------------------------------ param init ----------------------------------

def _init_conv(key, out_c, in_c, k):
    kw, kb = jax.random.split(key)
    bound = 1.0 / jnp.sqrt(in_c * k)
    w = jax.random.uniform(kw, (out_c, in_c, k), jnp.float32, -bound, bound)
    b = jax.random.uniform(kb, (out_c,), jnp.float32, -bound, bound)
    return w, b


def _init_bn(key, c):
    k1, k2, k3, k4 = jax.random.split(key, 4)
    gamma = jax.random.uniform(k1, (c,), jnp.float32, 0.5, 1.5)
    beta = jax.random.uniform(k2, (c,), jnp.float32, -0.2, 0.2)
    mean = jax.random.uniform(k3, (c,), jnp.float32, -0.2, 0.2)
    var = jax.random.uniform(k4, (c,), jnp.float32, 0.5, 1.5)
    return gamma, beta, mean, var


def init_params(key, input_dim, hidden_dim, n_class):
    params = {"encoders": []}
    for (k2, dil2) in ENC_CFGS:
        key, a, b, c, d = jax.random.split(key, 5)
        params["encoders"].append(dict(
            conv1=_init_conv(a, hidden_dim, input_dim, 3),
            bn1=_init_bn(b, hidden_dim),
            conv2=_init_conv(c, hidden_dim, hidden_dim, k2),
            bn2=_init_bn(d, hidden_dim),
            dilation2=dil2,
        ))
    key, kh = jax.random.split(key)
    params["w_head"] = 0.1 * jax.random.normal(kh, (n_class, hidden_dim),
                                               jnp.float32)
    return params


# --------------------------------- main --------------------------------------

if __name__ == "__main__":
    B, INPUT_DIM, L = 2, 4, 16
    HIDDEN_DIM, N_CLASS = 32, 4

    key = jax.random.PRNGKey(0)
    key, ksrc = jax.random.split(key)
    src = jax.random.normal(ksrc, (B, INPUT_DIM, L), jnp.float32)

    params = init_params(key, INPUT_DIM, HIDDEN_DIM, N_CLASS)

    out = jax.block_until_ready(forward(src, params))
    ref = jax.block_until_ready(ref_forward(src, params))

    assert out.shape == (B, N_CLASS), out.shape
    err = float(jnp.max(jnp.abs(out - ref)))
    assert err < 1e-2, f"max abs error vs reference: {err}"

    print("KERNEL_OK")
</pallas_src>

<mosaic_0001>
module attributes {stable_mosaic.version = 11 : i64} {
  func.func @kernel(%arg0: i32, %arg1: memref<32x4xf32, #tpu.memory_space<vmem>>, %arg2: memref<3x32x32xf32, #tpu.memory_space<vmem>>, %arg3: memref<3x4x96xf32, #tpu.memory_space<vmem>>, %arg4: memref<1x96xf32, #tpu.memory_space<vmem>>, %arg5: memref<1x96xf32, #tpu.memory_space<vmem>>, %arg6: memref<3x10x32xf32, #tpu.memory_space<vmem>>, %arg7: memref<3x96x32xf32, #tpu.memory_space<vmem>>, %arg8: memref<1x32xf32, #tpu.memory_space<vmem>>, %arg9: memref<1x32xf32, #tpu.memory_space<vmem>>, %arg10: memref<5x10x32xf32, #tpu.memory_space<vmem>>, %arg11: memref<5x96x32xf32, #tpu.memory_space<vmem>>, %arg12: memref<1x32xf32, #tpu.memory_space<vmem>>, %arg13: memref<1x32xf32, #tpu.memory_space<vmem>>, %arg14: memref<7x12x32xf32, #tpu.memory_space<vmem>>, %arg15: memref<7x96x32xf32, #tpu.memory_space<vmem>>, %arg16: memref<1x32xf32, #tpu.memory_space<vmem>>, %arg17: memref<1x32xf32, #tpu.memory_space<vmem>>, %arg18: memref<32x128xf32, #tpu.memory_space<vmem>>, %arg19: memref<2x128xf32, #tpu.memory_space<vmem>>) attributes {dimension_semantics = [#tpu.dimension_semantics<arbitrary>], iteration_bounds = array<i64: 1>, scalar_prefetch = 0 : i64, scratch_operands = 0 : i64, tpu.core_type = #tpu.core_type<tc>, window_params = [{pipeline_mode = #tpu.pipeline_mode<synchronous>, transform_indices = @transform_0, window_bounds = array<i64: 32, 4>}, {pipeline_mode = #tpu.pipeline_mode<synchronous>, transform_indices = @transform_1, window_bounds = array<i64: 3, 32, 32>}, {pipeline_mode = #tpu.pipeline_mode<synchronous>, transform_indices = @transform_2, window_bounds = array<i64: 3, 4, 96>}, {pipeline_mode = #tpu.pipeline_mode<synchronous>, transform_indices = @transform_3, window_bounds = array<i64: 1, 96>}, {pipeline_mode = #tpu.pipeline_mode<synchronous>, transform_indices = @transform_4, window_bounds = array<i64: 1, 96>}, {pipeline_mode = #tpu.pipeline_mode<synchronous>, transform_indices = @transform_5, window_bounds = array<i64: 3, 10, 32>}, {pipeline_mode = #tpu.pipeline_mode<synchronous>, transform_indices = @transform_6, window_bounds = array<i64: 3, 96, 32>}, {pipeline_mode = #tpu.pipeline_mode<synchronous>, transform_indices = @transform_7, window_bounds = array<i64: 1, 32>}, {pipeline_mode = #tpu.pipeline_mode<synchronous>, transform_indices = @transform_8, window_bounds = array<i64: 1, 32>}, {pipeline_mode = #tpu.pipeline_mode<synchronous>, transform_indices = @transform_9, window_bounds = array<i64: 5, 10, 32>}, {pipeline_mode = #tpu.pipeline_mode<synchronous>, transform_indices = @transform_10, window_bounds = array<i64: 5, 96, 32>}, {pipeline_mode = #tpu.pipeline_mode<synchronous>, transform_indices = @transform_11, window_bounds = array<i64: 1, 32>}, {pipeline_mode = #tpu.pipeline_mode<synchronous>, transform_indices = @transform_12, window_bounds = array<i64: 1, 32>}, {pipeline_mode = #tpu.pipeline_mode<synchronous>, transform_indices = @transform_13, window_bounds = array<i64: 7, 12, 32>}, {pipeline_mode = #tpu.pipeline_mode<synchronous>, transform_indices = @transform_14, window_bounds = array<i64: 7, 96, 32>}, {pipeline_mode = #tpu.pipeline_mode<synchronous>, transform_indices = @transform_15, window_bounds = array<i64: 1, 32>}, {pipeline_mode = #tpu.pipeline_mode<synchronous>, transform_indices = @transform_16, window_bounds = array<i64: 1, 32>}, {pipeline_mode = #tpu.pipeline_mode<synchronous>, transform_indices = @transform_17, window_bounds = array<i64: 32, 128>}, {pipeline_mode = #tpu.pipeline_mode<synchronous>, transform_indices = @transform_18, window_bounds = array<i64: 2, 128>}]} {
    %c0 = arith.constant 0 : index
    %c0_0 = arith.constant 0 : index
    %0 = vector.load %arg1[%c0, %c0_0] : memref<32x4xf32, #tpu.memory_space<vmem>>, vector<32x4xf32>
    %cst = arith.constant 0.000000e+00 : f32
    %1 = vector.broadcast %cst : f32 to vector<32x96xf32>
    %c0_1 = arith.constant 0 : index
    %c0_2 = arith.constant 0 : index
    %c0_3 = arith.constant 0 : index
    %2 = vector.load %arg2[%c0_1, %c0_2, %c0_3] : memref<3x32x32xf32, #tpu.memory_space<vmem>>, vector<1x32x32xf32>
    %3 = vector.shape_cast %2 : vector<1x32x32xf32> to vector<32x32xf32>
    %cst_4 = arith.constant dense<0.000000e+00> : vector<32x4xf32>
    %4 = tpu.matmul %3, %0, %cst_4 {dimension_numbers = #tpu.dot_dimension_numbers<[1], [0], [0], [1], [0, 0, 1, 1], [], []>} : vector<32x32xf32>, vector<32x4xf32>, vector<32x4xf32> -> vector<32x4xf32>
    %c0_5 = arith.constant 0 : index
    %c0_6 = arith.constant 0 : index
    %c0_7 = arith.constant 0 : index
    %5 = vector.load %arg3[%c0_5, %c0_6, %c0_7] : memref<3x4x96xf32, #tpu.memory_space<vmem>>, vector<1x4x96xf32>
    %6 = vector.shape_cast %5 : vector<1x4x96xf32> to vector<4x96xf32>
    %cst_8 = arith.constant dense<0.000000e+00> : vector<32x96xf32>
    %7 = tpu.matmul %4, %6, %cst_8 {dimension_numbers = #tpu.dot_dimension_numbers<[1], [0], [0], [1], [0, 0, 1, 1], [], []>} : vector<32x4xf32>, vector<4x96xf32>, vector<32x96xf32> -> vector<32x96xf32>
    %8 = arith.addf %1, %7 : vector<32x96xf32>
    %c1 = arith.constant 1 : index
    %c0_9 = arith.constant 0 : index
    %c0_10 = arith.constant 0 : index
    %9 = vector.load %arg2[%c1, %c0_9, %c0_10] : memref<3x32x32xf32, #tpu.memory_space<vmem>>, vector<1x32x32xf32>
    %10 = vector.shape_cast %9 : vector<1x32x32xf32> to vector<32x32xf32>
    %cst_11 = arith.constant dense<0.000000e+00> : vector<32x4xf32>
    %11 = tpu.matmul %10, %0, %cst_11 {dimension_numbers = #tpu.dot_dimension_numbers<[1], [0], [0], [1], [0, 0, 1, 1], [], []>} : vector<32x32xf32>, vector<32x4xf32>, vector<32x4xf32> -> vector<32x4xf32>
    %c1_12 = arith.constant 1 : index
    %c0_13 = arith.constant 0 : index
    %c0_14 = arith.constant 0 : index
    %12 = vector.load %arg3[%c1_12, %c0_13, %c0_14] : memref<3x4x96xf32, #tpu.memory_space<vmem>>, vector<1x4x96xf32>
    %13 = vector.shape_cast %12 : vector<1x4x96xf32> to vector<4x96xf32>
    %cst_15 = arith.constant dense<0.000000e+00> : vector<32x96xf32>
    %14 = tpu.matmul %11, %13, %cst_15 {dimension_numbers = #tpu.dot_dimension_numbers<[1], [0], [0], [1], [0, 0, 1, 1], [], []>} : vector<32x4xf32>, vector<4x96xf32>, vector<32x96xf32> -> vector<32x96xf32>
    %15 = arith.addf %8, %14 : vector<32x96xf32>
    %c2 = arith.constant 2 : index
    %c0_16 = arith.constant 0 : index
    %c0_17 = arith.constant 0 : index
    %16 = vector.load %arg2[%c2, %c0_16, %c0_17] : memref<3x32x32xf32, #tpu.memory_space<vmem>>, vector<1x32x32xf32>
    %17 = vector.shape_cast %16 : vector<1x32x32xf32> to vector<32x32xf32>
    %cst_18 = arith.constant dense<0.000000e+00> : vector<32x4xf32>
    %18 = tpu.matmul %17, %0, %cst_18 {dimension_numbers = #tpu.dot_dimension_numbers<[1], [0], [0], [1], [0, 0, 1, 1], [], []>} : vector<32x32xf32>, vector<32x4xf32>, vector<32x4xf32> -> vector<32x4xf32>
    %c2_19 = arith.constant 2 : index
    %c0_20 = arith.constant 0 : index
    %c0_21 = arith.constant 0 : index
    %19 = vector.load %arg3[%c2_19, %c0_20, %c0_21] : memref<3x4x96xf32, #tpu.memory_space<vmem>>, vector<1x4x96xf32>
    %20 = vector.shape_cast %19 : vector<1x4x96xf32> to vector<4x96xf32>
    %cst_22 = arith.constant dense<0.000000e+00> : vector<32x96xf32>
    %21 = tpu.matmul %18, %20, %cst_22 {dimension_numbers = #tpu.dot_dimension_numbers<[1], [0], [0], [1], [0, 0, 1, 1], [], []>} : vector<32x4xf32>, vector<4x96xf32>, vector<32x96xf32> -> vector<32x96xf32>
    %22 = arith.addf %15, %21 : vector<32x96xf32>
    %c0_23 = arith.constant 0 : index
    %c0_24 = arith.constant 0 : index
    %23 = vector.load %arg4[%c0_23, %c0_24] : memref<1x96xf32, #tpu.memory_space<vmem>>, vector<1x96xf32>
    %24 = vector.broadcast %23 : vector<1x96xf32> to vector<32x96xf32>
    %25 = arith.mulf %22, %24 : vector<32x96xf32>
    %c0_25 = arith.constant 0 : index
    %c0_26 = arith.constant 0 : index
    %26 = vector.load %arg5[%c0_25, %c0_26] : memref<1x96xf32, #tpu.memory_space<vmem>>, vector<1x96xf32>
    %27 = vector.broadcast %26 : vector<1x96xf32> to vector<32x96xf32>
    %28 = arith.addf %25, %27 : vector<32x96xf32>
    %cst_27 = arith.constant 0.000000e+00 : f32
    %29 = vector.broadcast %cst_27 : f32 to vector<32x96xf32>
    %30 = arith.maximumf %28, %29 : vector<32x96xf32>
    %cst_28 = arith.constant 0.000000e+00 : f32
    %31 = vector.broadcast %cst_28 : f32 to vector<1x128xf32>
    %cst_29 = arith.constant 0.000000e+00 : f32
    %32 = vector.broadcast %cst_29 : f32 to vector<1x128xf32>
    %cst_30 = arith.constant 0xFF800000 : f32
    %33 = vector.broadcast %cst_30 : f32 to vector<1x128xf32>
    %cst_31 = arith.constant 0xFF800000 : f32
    %34 = vector.broadcast %cst_31 : f32 to vector<1x128xf32>
    %cst_32 = arith.constant 0.000000e+00 : f32
    %35 = vector.broadcast %cst_32 : f32 to vector<10x32xf32>
    %c0_33 = arith.constant 0 : index
    %c0_34 = arith.constant 0 : index
    %c0_35 = arith.constant 0 : index
    %36 = vector.load %arg6[%c0_33, %c0_34, %c0_35] : memref<3x10x32xf32, #tpu.memory_space<vmem>>, vector<1x10x32xf32>
    %37 = vector.shape_cast %36 : vector<1x10x32xf32> to vector<10x32xf32>
    %cst_36 = arith.constant dense<0.000000e+00> : vector<10x96xf32>
    %38 = tpu.matmul %37, %30, %cst_36 {dimension_numbers = #tpu.dot_dimension_numbers<[1], [0], [0], [1], [0, 0, 1, 1], [], []>} : vector<10x32xf32>, vector<32x96xf32>, vector<10x96xf32> -> vector<10x96xf32>
    %c0_37 = arith.constant 0 : index
    %c0_38 = arith.constant 0 : index
    %c0_39 = arith.constant 0 : index
    %39 = vector.load %arg7[%c0_37, %c0_38, %c0_39] : memref<3x96x32xf32, #tpu.memory_space<vmem>>, vector<1x96x32xf32>
    %40 = vector.shape_cast %39 : vector<1x96x32xf32> to vector<96x32xf32>
    %cst_40 = arith.constant dense<0.000000e+00> : vector<10x32xf32>
    %41 = tpu.matmul %38, %40, %cst_40 {dimension_numbers = #tpu.dot_dimension_numbers<[1], [0], [0], [1], [0, 0, 1, 1], [], []>} : vector<10x96xf32>, vector<96x32xf32>, vector<10x32xf32> -> vector<10x32xf32>
    %42 = arith.addf %35, %41 : vector<10x32xf32>
    %c1_41 = arith.constant 1 : index
    %c0_42 = arith.constant 0 : index
    %c0_43 = arith.constant 0 : index
    %43 = vector.load %arg6[%c1_41, %c0_42, %c0_43] : memref<3x10x32xf32, #tpu.memory_space<vmem>>, vector<1x10x32xf32>
    %44 = vector.shape_cast %43 : vector<1x10x32xf32> to vector<10x32xf32>
    %cst_44 = arith.constant dense<0.000000e+00> : vector<10x96xf32>
    %45 = tpu.matmul %44, %30, %cst_44 {dimension_numbers = #tpu.dot_dimension_numbers<[1], [0], [0], [1], [0, 0, 1, 1], [], []>} : vector<10x32xf32>, vector<32x96xf32>, vector<10x96xf32> -> vector<10x96xf32>
    %c1_45 = arith.constant 1 : index
    %c0_46 = arith.constant 0 : index
    %c0_47 = arith.constant 0 : index
    %46 = vector.load %arg7[%c1_45, %c0_46, %c0_47] : memref<3x96x32xf32, #tpu.memory_space<vmem>>, vector<1x96x32xf32>
    %47 = vector.shape_cast %46 : vector<1x96x32xf32> to vector<96x32xf32>
    %cst_48 = arith.constant dense<0.000000e+00> : vector<10x32xf32>
    %48 = tpu.matmul %45, %47, %cst_48 {dimension_numbers = #tpu.dot_dimension_numbers<[1], [0], [0], [1], [0, 0, 1, 1], [], []>} : vector<10x96xf32>, vector<96x32xf32>, vector<10x32xf32> -> vector<10x32xf32>
    %49 = arith.addf %42, %48 : vector<10x32xf32>
    %c2_49 = arith.constant 2 : index
    %c0_50 = arith.constant 0 : index
    %c0_51 = arith.constant 0 : index
    %50 = vector.load %arg6[%c2_49, %c0_50, %c0_51] : memref<3x10x32xf32, #tpu.memory_space<vmem>>, vector<1x10x32xf32>
    %51 = vector.shape_cast %50 : vector<1x10x32xf32> to vector<10x32xf32>
    %cst_52 = arith.constant dense<0.000000e+00> : vector<10x96xf32>
    %52 = tpu.matmul %51, %30, %cst_52 {dimension_numbers = #tpu.dot_dimension_numbers<[1], [0], [0], [1], [0, 0, 1, 1], [], []>} : vector<10x32xf32>, vector<32x96xf32>, vector<10x96xf32> -> vector<10x96xf32>
    %c2_53 = arith.constant 2 : index
    %c0_54 = arith.constant 0 : index
    %c0_55 = arith.constant 0 : index
    %53 = vector.load %arg7[%c2_53, %c0_54, %c0_55] : memref<3x96x32xf32, #tpu.memory_space<vmem>>, vector<1x96x32xf32>
    %54 = vector.shape_cast %53 : vector<1x96x32xf32> to vector<96x32xf32>
    %cst_56 = arith.constant dense<0.000000e+00> : vector<10x32xf32>
    %55 = tpu.matmul %52, %54, %cst_56 {dimension_numbers = #tpu.dot_dimension_numbers<[1], [0], [0], [1], [0, 0, 1, 1], [], []>} : vector<10x96xf32>, vector<96x32xf32>, vector<10x32xf32> -> vector<10x32xf32>
    %56 = arith.addf %49, %55 : vector<10x32xf32>
    %c0_57 = arith.constant 0 : index
    %c0_58 = arith.constant 0 : index
    %57 = vector.load %arg8[%c0_57, %c0_58] : memref<1x32xf32, #tpu.memory_space<vmem>>, vector<1x32xf32>
    %58 = vector.broadcast %57 : vector<1x32xf32> to vector<10x32xf32>
    %59 = arith.mulf %56, %58 : vector<10x32xf32>
    %c0_59 = arith.constant 0 : index
    %c0_60 = arith.constant 0 : index
    %60 = vector.load %arg9[%c0_59, %c0_60] : memref<1x32xf32, #tpu.memory_space<vmem>>, vector<1x32xf32>
    %61 = vector.broadcast %60 : vector<1x32xf32> to vector<10x32xf32>
    %62 = arith.addf %59, %61 : vector<10x32xf32>
    %cst_61 = arith.constant 0.000000e+00 : f32
    %63 = vector.broadcast %cst_61 : f32 to vector<10x32xf32>
    %64 = arith.maximumf %62, %63 : vector<10x32xf32>
    %c0_62 = arith.constant 0 : index
    %c0_63 = arith.constant 0 : index
    %65 = vector.load %arg18[%c0_62, %c0_63] : memref<32x128xf32, #tpu.memory_space<vmem>>, vector<32x128xf32>
    %cst_64 = arith.constant dense<0.000000e+00> : vector<10x128xf32>
    %66 = tpu.matmul %64, %65, %cst_64 {dimension_numbers = #tpu.dot_dimension_numbers<[1], [0], [0], [1], [0, 0, 1, 1], [], []>} : vector<10x32xf32>, vector<32x128xf32>, vector<10x128xf32> -> vector<10x128xf32>
    %67 = vector.extract_strided_slice %66 {offsets = [0, 0], sizes = [5, 128], strides = [1, 1]} : vector<10x128xf32> to vector<5x128xf32>
    %cst_65 = arith.constant dense<0.000000e+00> : vector<128xf32>
    %68 = vector.multi_reduction <add>, %67, %cst_65 [0] : vector<5x128xf32> to vector<128xf32>
    %69 = vector.shape_cast %68 : vector<128xf32> to vector<1x128xf32>
    %70 = arith.addf %31, %69 : vector<1x128xf32>
    %cst_66 = arith.constant dense<0xFF800000> : vector<128xf32>
    %71 = vector.multi_reduction <maximumf>, %67, %cst_66 [0] : vector<5x128xf32> to vector<128xf32>
    %72 = vector.shape_cast %71 : vector<128xf32> to vector<1x128xf32>
    %73 = arith.maximumf %33, %72 : vector<1x128xf32>
    %74 = vector.extract_strided_slice %66 {offsets = [5, 0], sizes = [5, 128], strides = [1, 1]} : vector<10x128xf32> to vector<5x128xf32>
    %cst_67 = arith.constant dense<0.000000e+00> : vector<128xf32>
    %75 = vector.multi_reduction <add>, %74, %cst_67 [0] : vector<5x128xf32> to vector<128xf32>
    %76 = vector.shape_cast %75 : vector<128xf32> to vector<1x128xf32>
    %77 = arith.addf %32, %76 : vector<1x128xf32>
    %cst_68 = arith.constant dense<0xFF800000> : vector<128xf32>
    %78 = vector.multi_reduction <maximumf>, %74, %cst_68 [0] : vector<5x128xf32> to vector<128xf32>
    %79 = vector.shape_cast %78 : vector<128xf32> to vector<1x128xf32>
    %80 = arith.maximumf %34, %79 : vector<1x128xf32>
    %cst_69 = arith.constant 0.000000e+00 : f32
    %81 = vector.broadcast %cst_69 : f32 to vector<10x32xf32>
    %c0_70 = arith.constant 0 : index
    %c0_71 = arith.constant 0 : index
    %c0_72 = arith.constant 0 : index
    %82 = vector.load %arg10[%c0_70, %c0_71, %c0_72] : memref<5x10x32xf32, #tpu.memory_space<vmem>>, vector<1x10x32xf32>
    %83 = vector.shape_cast %82 : vector<1x10x32xf32> to vector<10x32xf32>
    %cst_73 = arith.constant dense<0.000000e+00> : vector<10x96xf32>
    %84 = tpu.matmul %83, %30, %cst_73 {dimension_numbers = #tpu.dot_dimension_numbers<[1], [0], [0], [1], [0, 0, 1, 1], [], []>} : vector<10x32xf32>, vector<32x96xf32>, vector<10x96xf32> -> vector<10x96xf32>
    %c0_74 = arith.constant 0 : index
    %c0_75 = arith.constant 0 : index
    %c0_76 = arith.constant 0 : index
    %85 = vector.load %arg11[%c0_74, %c0_75, %c0_76] : memref<5x96x32xf32, #tpu.memory_space<vmem>>, vector<1x96x32xf32>
    %86 = vector.shape_cast %85 : vector<1x96x32xf32> to vector<96x32xf32>
    %cst_77 = arith.constant dense<0.000000e+00> : vector<10x32xf32>
    %87 = tpu.matmul %84, %86, %cst_77 {dimension_numbers = #tpu.dot_dimension_numbers<[1], [0], [0], [1], [0, 0, 1, 1], [], []>} : vector<10x96xf32>, vector<96x32xf32>, vector<10x32xf32> -> vector<10x32xf32>
    %88 = arith.addf %81, %87 : vector<10x32xf32>
    %c1_78 = arith.constant 1 : index
    %c0_79 = arith.constant 0 : index
    %c0_80 = arith.constant 0 : index
    %89 = vector.load %arg10[%c1_78, %c0_79, %c0_80] : memref<5x10x32xf32, #tpu.memory_space<vmem>>, vector<1x10x32xf32>
    %90 = vector.shape_cast %89 : vector<1x10x32xf32> to vector<10x32xf32>
    %cst_81 = arith.constant dense<0.000000e+00> : vector<10x96xf32>
    %91 = tpu.matmul %90, %30, %cst_81 {dimension_numbers = #tpu.dot_dimension_numbers<[1], [0], [0], [1], [0, 0, 1, 1], [], []>} : vector<10x32xf32>, vector<32x96xf32>, vector<10x96xf32> -> vector<10x96xf32>
    %c1_82 = arith.constant 1 : index
    %c0_83 = arith.constant 0 : index
    %c0_84 = arith.constant 0 : index
    %92 = vector.load %arg11[%c1_82, %c0_83, %c0_84] : memref<5x96x32xf32, #tpu.memory_space<vmem>>, vector<1x96x32xf32>
    %93 = vector.shape_cast %92 : vector<1x96x32xf32> to vector<96x32xf32>
    %cst_85 = arith.constant dense<0.000000e+00> : vector<10x32xf32>
    %94 = tpu.matmul %91, %93, %cst_85 {dimension_numbers = #tpu.dot_dimension_numbers<[1], [0], [0], [1], [0, 0, 1, 1], [], []>} : vector<10x96xf32>, vector<96x32xf32>, vector<10x32xf32> -> vector<10x32xf32>
    %95 = arith.addf %88, %94 : vector<10x32xf32>
    %c2_86 = arith.constant 2 : index
    %c0_87 = arith.constant 0 : index
    %c0_88 = arith.constant 0 : index
    %96 = vector.load %arg10[%c2_86, %c0_87, %c0_88] : memref<5x10x32xf32, #tpu.memory_space<vmem>>, vector<1x10x32xf32>
    %97 = vector.shape_cast %96 : vector<1x10x32xf32> to vector<10x32xf32>
    %cst_89 = arith.constant dense<0.000000e+00> : vector<10x96xf32>
    %98 = tpu.matmul %97, %30, %cst_89 {dimension_numbers = #tpu.dot_dimension_numbers<[1], [0], [0], [1], [0, 0, 1, 1], [], []>} : vector<10x32xf32>, vector<32x96xf32>, vector<10x96xf32> -> vector<10x96xf32>
    %c2_90 = arith.constant 2 : index
    %c0_91 = arith.constant 0 : index
    %c0_92 = arith.constant 0 : index
    %99 = vector.load %arg11[%c2_90, %c0_91, %c0_92] : memref<5x96x32xf32, #tpu.memory_space<vmem>>, vector<1x96x32xf32>
    %100 = vector.shape_cast %99 : vector<1x96x32xf32> to vector<96x32xf32>
    %cst_93 = arith.constant dense<0.000000e+00> : vector<10x32xf32>
    %101 = tpu.matmul %98, %100, %cst_93 {dimension_numbers = #tpu.dot_dimension_numbers<[1], [0], [0], [1], [0, 0, 1, 1], [], []>} : vector<10x96xf32>, vector<96x32xf32>, vector<10x32xf32> -> vector<10x32xf32>
    %102 = arith.addf %95, %101 : vector<10x32xf32>
    %c3 = arith.constant 3 : index
    %c0_94 = arith.constant 0 : index
    %c0_95 = arith.constant 0 : index
    %103 = vector.load %arg10[%c3, %c0_94, %c0_95] : memref<5x10x32xf32, #tpu.memory_space<vmem>>, vector<1x10x32xf32>
    %104 = vector.shape_cast %103 : vector<1x10x32xf32> to vector<10x32xf32>
    %cst_96 = arith.constant dense<0.000000e+00> : vector<10x96xf32>
    %105 = tpu.matmul %104, %30, %cst_96 {dimension_numbers = #tpu.dot_dimension_numbers<[1], [0], [0], [1], [0, 0, 1, 1], [], []>} : vector<10x32xf32>, vector<32x96xf32>, vector<10x96xf32> -> vector<10x96xf32>
    %c3_97 = arith.constant 3 : index
    %c0_98 = arith.constant 0 : index
    %c0_99 = arith.constant 0 : index
    %106 = vector.load %arg11[%c3_97, %c0_98, %c0_99] : memref<5x96x32xf32, #tpu.memory_space<vmem>>, vector<1x96x32xf32>
    %107 = vector.shape_cast %106 : vector<1x96x32xf32> to vector<96x32xf32>
    %cst_100 = arith.constant dense<0.000000e+00> : vector<10x32xf32>
    %108 = tpu.matmul %105, %107, %cst_100 {dimension_numbers = #tpu.dot_dimension_numbers<[1], [0], [0], [1], [0, 0, 1, 1], [], []>} : vector<10x96xf32>, vector<96x32xf32>, vector<10x32xf32> -> vector<10x32xf32>
    %109 = arith.addf %102, %108 : vector<10x32xf32>
    %c4 = arith.constant 4 : index
    %c0_101 = arith.constant 0 : index
    %c0_102 = arith.constant 0 : index
    %110 = vector.load %arg10[%c4, %c0_101, %c0_102] : memref<5x10x32xf32, #tpu.memory_space<vmem>>, vector<1x10x32xf32>
    %111 = vector.shape_cast %110 : vector<1x10x32xf32> to vector<10x32xf32>
    %cst_103 = arith.constant dense<0.000000e+00> : vector<10x96xf32>
    %112 = tpu.matmul %111, %30, %cst_103 {dimension_numbers = #tpu.dot_dimension_numbers<[1], [0], [0], [1], [0, 0, 1, 1], [], []>} : vector<10x32xf32>, vector<32x96xf32>, vector<10x96xf32> -> vector<10x96xf32>
    %c4_104 = arith.constant 4 : index
    %c0_105 = arith.constant 0 : index
    %c0_106 = arith.constant 0 : index
    %113 = vector.load %arg11[%c4_104, %c0_105, %c0_106] : memref<5x96x32xf32, #tpu.memory_space<vmem>>, vector<1x96x32xf32>
    %114 = vector.shape_cast %113 : vector<1x96x32xf32> to vector<96x32xf32>
    %cst_107 = arith.constant dense<0.000000e+00> : vector<10x32xf32>
    %115 = tpu.matmul %112, %114, %cst_107 {dimension_numbers = #tpu.dot_dimension_numbers<[1], [0], [0], [1], [0, 0, 1, 1], [], []>} : vector<10x96xf32>, vector<96x32xf32>, vector<10x32xf32> -> vector<10x32xf32>
    %116 = arith.addf %109, %115 : vector<10x32xf32>
    %c0_108 = arith.constant 0 : index
    %c0_109 = arith.constant 0 : index
    %117 = vector.load %arg12[%c0_108, %c0_109] : memref<1x32xf32, #tpu.memory_space<vmem>>, vector<1x32xf32>
    %118 = vector.broadcast %117 : vector<1x32xf32> to vector<10x32xf32>
    %119 = arith.mulf %116, %118 : vector<10x32xf32>
    %c0_110 = arith.constant 0 : index
    %c0_111 = arith.constant 0 : index
    %120 = vector.load %arg13[%c0_110, %c0_111] : memref<1x32xf32, #tpu.memory_space<vmem>>, vector<1x32xf32>
    %121 = vector.broadcast %120 : vector<1x32xf32> to vector<10x32xf32>
    %122 = arith.addf %119, %121 : vector<10x32xf32>
    %cst_112 = arith.constant 0.000000e+00 : f32
    %123 = vector.broadcast %cst_112 : f32 to vector<10x32xf32>
    %124 = arith.maximumf %122, %123 : vector<10x32xf32>
    %c0_113 = arith.constant 0 : index
    %c0_114 = arith.constant 0 : index
    %125 = vector.load %arg18[%c0_113, %c0_114] : memref<32x128xf32, #tpu.memory_space<vmem>>, vector<32x128xf32>
    %cst_115 = arith.constant dense<0.000000e+00> : vector<10x128xf32>
    %126 = tpu.matmul %124, %125, %cst_115 {dimension_numbers = #tpu.dot_dimension_numbers<[1], [0], [0], [1], [0, 0, 1, 1], [], []>} : vector<10x32xf32>, vector<32x128xf32>, vector<10x128xf32> -> vector<10x128xf32>
    %127 = vector.extract_strided_slice %126 {offsets = [0, 0], sizes = [5, 128], strides = [1, 1]} : vector<10x128xf32> to vector<5x128xf32>
    %cst_116 = arith.constant dense<0.000000e+00> : vector<128xf32>
    %128 = vector.multi_reduction <add>, %127, %cst_116 [0] : vector<5x128xf32> to vector<128xf32>
    %129 = vector.shape_cast %128 : vector<128xf32> to vector<1x128xf32>
    %130 = arith.addf %70, %129 : vector<1x128xf32>
    %cst_117 = arith.constant dense<0xFF800000> : vector<128xf32>
    %131 = vector.multi_reduction <maximumf>, %127, %cst_117 [0] : vector<5x128xf32> to vector<128xf32>
    %132 = vector.shape_cast %131 : vector<128xf32> to vector<1x128xf32>
    %133 = arith.maximumf %73, %132 : vector<1x128xf32>
    %134 = vector.extract_strided_slice %126 {offsets = [5, 0], sizes = [5, 128], strides = [1, 1]} : vector<10x128xf32> to vector<5x128xf32>
    %cst_118 = arith.constant dense<0.000000e+00> : vector<128xf32>
    %135 = vector.multi_reduction <add>, %134, %cst_118 [0] : vector<5x128xf32> to vector<128xf32>
    %136 = vector.shape_cast %135 : vector<128xf32> to vector<1x128xf32>
    %137 = arith.addf %77, %136 : vector<1x128xf32>
    %cst_119 = arith.constant dense<0xFF800000> : vector<128xf32>
    %138 = vector.multi_reduction <maximumf>, %134, %cst_119 [0] : vector<5x128xf32> to vector<128xf32>
    %139 = vector.shape_cast %138 : vector<128xf32> to vector<1x128xf32>
    %140 = arith.maximumf %80, %139 : vector<1x128xf32>
    %cst_120 = arith.constant 0.000000e+00 : f32
    %141 = vector.broadcast %cst_120 : f32 to vector<12x32xf32>
    %c0_121 = arith.constant 0 : index
    %c0_122 = arith.constant 0 : index
    %c0_123 = arith.constant 0 : index
    %142 = vector.load %arg14[%c0_121, %c0_122, %c0_123] : memref<7x12x32xf32, #tpu.memory_space<vmem>>, vector<1x12x32xf32>
    %143 = vector.shape_cast %142 : vector<1x12x32xf32> to vector<12x32xf32>
    %cst_124 = arith.constant dense<0.000000e+00> : vector<12x96xf32>
    %144 = tpu.matmul %143, %30, %cst_124 {dimension_numbers = #tpu.dot_dimension_numbers<[1], [0], [0], [1], [0, 0, 1, 1], [], []>} : vector<12x32xf32>, vector<32x96xf32>, vector<12x96xf32> -> vector<12x96xf32>
    %c0_125 = arith.constant 0 : index
    %c0_126 = arith.constant 0 : index
    %c0_127 = arith.constant 0 : index
    %145 = vector.load %arg15[%c0_125, %c0_126, %c0_127] : memref<7x96x32xf32, #tpu.memory_space<vmem>>, vector<1x96x32xf32>
    %146 = vector.shape_cast %145 : vector<1x96x32xf32> to vector<96x32xf32>
    %cst_128 = arith.constant dense<0.000000e+00> : vector<12x32xf32>
    %147 = tpu.matmul %144, %146, %cst_128 {dimension_numbers = #tpu.dot_dimension_numbers<[1], [0], [0], [1], [0, 0, 1, 1], [], []>} : vector<12x96xf32>, vector<96x32xf32>, vector<12x32xf32> -> vector<12x32xf32>
    %148 = arith.addf %141, %147 : vector<12x32xf32>
    %c1_129 = arith.constant 1 : index
    %c0_130 = arith.constant 0 : index
    %c0_131 = arith.constant 0 : index
    %149 = vector.load %arg14[%c1_129, %c0_130, %c0_131] : memref<7x12x32xf32, #tpu.memory_space<vmem>>, vector<1x12x32xf32>
    %150 = vector.shape_cast %149 : vector<1x12x32xf32> to vector<12x32xf32>
    %cst_132 = arith.constant dense<0.000000e+00> : vector<12x96xf32>
    %151 = tpu.matmul %150, %30, %cst_132 {dimension_numbers = #tpu.dot_dimension_numbers<[1], [0], [0], [1], [0, 0, 1, 1], [], []>} : vector<12x32xf32>, vector<32x96xf32>, vector<12x96xf32> -> vector<12x96xf32>
    %c1_133 = arith.constant 1 : index
    %c0_134 = arith.constant 0 : index
    %c0_135 = arith.constant 0 : index
    %152 = vector.load %arg15[%c1_133, %c0_134, %c0_135] : memref<7x96x32xf32, #tpu.memory_space<vmem>>, vector<1x96x32xf32>
    %153 = vector.shape_cast %152 : vector<1x96x32xf32> to vector<96x32xf32>
    %cst_136 = arith.constant dense<0.000000e+00> : vector<12x32xf32>
    %154 = tpu.matmul %151, %153, %cst_136 {dimension_numbers = #tpu.dot_dimension_numbers<[1], [0], [0], [1], [0, 0, 1, 1], [], []>} : vector<12x96xf32>, vector<96x32xf32>, vector<12x32xf32> -> vector<12x32xf32>
    %155 = arith.addf %148, %154 : vector<12x32xf32>
    %c2_137 = arith.constant 2 : index
    %c0_138 = arith.constant 0 : index
    %c0_139 = arith.constant 0 : index
    %156 = vector.load %arg14[%c2_137, %c0_138, %c0_139] : memref<7x12x32xf32, #tpu.memory_space<vmem>>, vector<1x12x32xf32>
    %157 = vector.shape_cast %156 : vector<1x12x32xf32> to vector<12x32xf32>
    %cst_140 = arith.constant dense<0.000000e+00> : vector<12x96xf32>
    %158 = tpu.matmul %157, %30, %cst_140 {dimension_numbers = #tpu.dot_dimension_numbers<[1], [0], [0], [1], [0, 0, 1, 1], [], []>} : vector<12x32xf32>, vector<32x96xf32>, vector<12x96xf32> -> vector<12x96xf32>
    %c2_141 = arith.constant 2 : index
    %c0_142 = arith.constant 0 : index
    %c0_143 = arith.constant 0 : index
    %159 = vector.load %arg15[%c2_141, %c0_142, %c0_143] : memref<7x96x32xf32, #tpu.memory_space<vmem>>, vector<1x96x32xf32>
    %160 = vector.shape_cast %159 : vector<1x96x32xf32> to vector<96x32xf32>
    %cst_144 = arith.constant dense<0.000000e+00> : vector<12x32xf32>
    %161 = tpu.matmul %158, %160, %cst_144 {dimension_numbers = #tpu.dot_dimension_numbers<[1], [0], [0], [1], [0, 0, 1, 1], [], []>} : vector<12x96xf32>, vector<96x32xf32>, vector<12x32xf32> -> vector<12x32xf32>
    %162 = arith.addf %155, %161 : vector<12x32xf32>
    %c3_145 = arith.constant 3 : index
    %c0_146 = arith.constant 0 : index
    %c0_147 = arith.constant 0 : index
    %163 = vector.load %arg14[%c3_145, %c0_146, %c0_147] : memref<7x12x32xf32, #tpu.memory_space<vmem>>, vector<1x12x32xf32>
    %164 = vector.shape_cast %163 : vector<1x12x32xf32> to vector<12x32xf32>
    %cst_148 = arith.constant dense<0.000000e+00> : vector<12x96xf32>
    %165 = tpu.matmul %164, %30, %cst_148 {dimension_numbers = #tpu.dot_dimension_numbers<[1], [0], [0], [1], [0, 0, 1, 1], [], []>} : vector<12x32xf32>, vector<32x96xf32>, vector<12x96xf32> -> vector<12x96xf32>
    %c3_149 = arith.constant 3 : index
    %c0_150 = arith.constant 0 : index
    %c0_151 = arith.constant 0 : index
    %166 = vector.load %arg15[%c3_149, %c0_150, %c0_151] : memref<7x96x32xf32, #tpu.memory_space<vmem>>, vector<1x96x32xf32>
    %167 = vector.shape_cast %166 : vector<1x96x32xf32> to vector<96x32xf32>
    %cst_152 = arith.constant dense<0.000000e+00> : vector<12x32xf32>
    %168 = tpu.matmul %165, %167, %cst_152 {dimension_numbers = #tpu.dot_dimension_numbers<[1], [0], [0], [1], [0, 0, 1, 1], [], []>} : vector<12x96xf32>, vector<96x32xf32>, vector<12x32xf32> -> vector<12x32xf32>
    %169 = arith.addf %162, %168 : vector<12x32xf32>
    %c4_153 = arith.constant 4 : index
    %c0_154 = arith.constant 0 : index
    %c0_155 = arith.constant 0 : index
    %170 = vector.load %arg14[%c4_153, %c0_154, %c0_155] : memref<7x12x32xf32, #tpu.memory_space<vmem>>, vector<1x12x32xf32>
    %171 = vector.shape_cast %170 : vector<1x12x32xf32> to vector<12x32xf32>
    %cst_156 = arith.constant dense<0.000000e+00> : vector<12x96xf32>
    %172 = tpu.matmul %171, %30, %cst_156 {dimension_numbers = #tpu.dot_dimension_numbers<[1], [0], [0], [1], [0, 0, 1, 1], [], []>} : vector<12x32xf32>, vector<32x96xf32>, vector<12x96xf32> -> vector<12x96xf32>
    %c4_157 = arith.constant 4 : index
    %c0_158 = arith.constant 0 : index
    %c0_159 = arith.constant 0 : index
    %173 = vector.load %arg15[%c4_157, %c0_158, %c0_159] : memref<7x96x32xf32, #tpu.memory_space<vmem>>, vector<1x96x32xf32>
    %174 = vector.shape_cast %173 : vector<1x96x32xf32> to vector<96x32xf32>
    %cst_160 = arith.constant dense<0.000000e+00> : vector<12x32xf32>
    %175 = tpu.matmul %172, %174, %cst_160 {dimension_numbers = #tpu.dot_dimension_numbers<[1], [0], [0], [1], [0, 0, 1, 1], [], []>} : vector<12x96xf32>, vector<96x32xf32>, vector<12x32xf32> -> vector<12x32xf32>
    %176 = arith.addf %169, %175 : vector<12x32xf32>
    %c5 = arith.constant 5 : index
    %c0_161 = arith.constant 0 : index
    %c0_162 = arith.constant 0 : index
    %177 = vector.load %arg14[%c5, %c0_161, %c0_162] : memref<7x12x32xf32, #tpu.memory_space<vmem>>, vector<1x12x32xf32>
    %178 = vector.shape_cast %177 : vector<1x12x32xf32> to vector<12x32xf32>
    %cst_163 = arith.constant dense<0.000000e+00> : vector<12x96xf32>
    %179 = tpu.matmul %178, %30, %cst_163 {dimension_numbers = #tpu.dot_dimension_numbers<[1], [0], [0], [1], [0, 0, 1, 1], [], []>} : vector<12x32xf32>, vector<32x96xf32>, vector<12x96xf32> -> vector<12x96xf32>
    %c5_164 = arith.constant 5 : index
    %c0_165 = arith.constant 0 : index
    %c0_166 = arith.constant 0 : index
    %180 = vector.load %arg15[%c5_164, %c0_165, %c0_166] : memref<7x96x32xf32, #tpu.memory_space<vmem>>, vector<1x96x32xf32>
    %181 = vector.shape_cast %180 : vector<1x96x32xf32> to vector<96x32xf32>
    %cst_167 = arith.constant dense<0.000000e+00> : vector<12x32xf32>
    %182 = tpu.matmul %179, %181, %cst_167 {dimension_numbers = #tpu.dot_dimension_numbers<[1], [0], [0], [1], [0, 0, 1, 1], [], []>} : vector<12x96xf32>, vector<96x32xf32>, vector<12x32xf32> -> vector<12x32xf32>
    %183 = arith.addf %176, %182 : vector<12x32xf32>
    %c6 = arith.constant 6 : index
    %c0_168 = arith.constant 0 : index
    %c0_169 = arith.constant 0 : index
    %184 = vector.load %arg14[%c6, %c0_168, %c0_169] : memref<7x12x32xf32, #tpu.memory_space<vmem>>, vector<1x12x32xf32>
    %185 = vector.shape_cast %184 : vector<1x12x32xf32> to vector<12x32xf32>
    %cst_170 = arith.constant dense<0.000000e+00> : vector<12x96xf32>
    %186 = tpu.matmul %185, %30, %cst_170 {dimension_numbers = #tpu.dot_dimension_numbers<[1], [0], [0], [1], [0, 0, 1, 1], [], []>} : vector<12x32xf32>, vector<32x96xf32>, vector<12x96xf32> -> vector<12x96xf32>
    %c6_171 = arith.constant 6 : index
    %c0_172 = arith.constant 0 : index
    %c0_173 = arith.constant 0 : index
    %187 = vector.load %arg15[%c6_171, %c0_172, %c0_173] : memref<7x96x32xf32, #tpu.memory_space<vmem>>, vector<1x96x32xf32>
    %188 = vector.shape_cast %187 : vector<1x96x32xf32> to vector<96x32xf32>
    %cst_174 = arith.constant dense<0.000000e+00> : vector<12x32xf32>
    %189 = tpu.matmul %186, %188, %cst_174 {dimension_numbers = #tpu.dot_dimension_numbers<[1], [0], [0], [1], [0, 0, 1, 1], [], []>} : vector<12x96xf32>, vector<96x32xf32>, vector<12x32xf32> -> vector<12x32xf32>
    %190 = arith.addf %183, %189 : vector<12x32xf32>
    %c0_175 = arith.constant 0 : index
    %c0_176 = arith.constant 0 : index
    %191 = vector.load %arg16[%c0_175, %c0_176] : memref<1x32xf32, #tpu.memory_space<vmem>>, vector<1x32xf32>
    %192 = vector.broadcast %191 : vector<1x32xf32> to vector<12x32xf32>
    %193 = arith.mulf %190, %192 : vector<12x32xf32>
    %c0_177 = arith.constant 0 : index
    %c0_178 = arith.constant 0 : index
    %194 = vector.load %arg17[%c0_177, %c0_178] : memref<1x32xf32, #tpu.memory_space<vmem>>, vector<1x32xf32>
    %195 = vector.broadcast %194 : vector<1x32xf32> to vector<12x32xf32>
    %196 = arith.addf %193, %195 : vector<12x32xf32>
    %cst_179 = arith.constant 0.000000e+00 : f32
    %197 = vector.broadcast %cst_179 : f32 to vector<12x32xf32>
    %198 = arith.maximumf %196, %197 : vector<12x32xf32>
    %c0_180 = arith.constant 0 : index
    %c0_181 = arith.constant 0 : index
    %199 = vector.load %arg18[%c0_180, %c0_181] : memref<32x128xf32, #tpu.memory_space<vmem>>, vector<32x128xf32>
    %cst_182 = arith.constant dense<0.000000e+00> : vector<12x128xf32>
    %200 = tpu.matmul %198, %199, %cst_182 {dimension_numbers = #tpu.dot_dimension_numbers<[1], [0], [0], [1], [0, 0, 1, 1], [], []>} : vector<12x32xf32>, vector<32x128xf32>, vector<12x128xf32> -> vector<12x128xf32>
    %201 = vector.extract_strided_slice %200 {offsets = [0, 0], sizes = [6, 128], strides = [1, 1]} : vector<12x128xf32> to vector<6x128xf32>
    %cst_183 = arith.constant dense<0.000000e+00> : vector<128xf32>
    %202 = vector.multi_reduction <add>, %201, %cst_183 [0] : vector<6x128xf32> to vector<128xf32>
    %203 = vector.shape_cast %202 : vector<128xf32> to vector<1x128xf32>
    %204 = arith.addf %130, %203 : vector<1x128xf32>
    %cst_184 = arith.constant dense<0xFF800000> : vector<128xf32>
    %205 = vector.multi_reduction <maximumf>, %201, %cst_184 [0] : vector<6x128xf32> to vector<128xf32>
    %206 = vector.shape_cast %205 : vector<128xf32> to vector<1x128xf32>
    %207 = arith.maximumf %133, %206 : vector<1x128xf32>
    %208 = vector.extract_strided_slice %200 {offsets = [6, 0], sizes = [6, 128], strides = [1, 1]} : vector<12x128xf32> to vector<6x128xf32>
    %cst_185 = arith.constant dense<0.000000e+00> : vector<128xf32>
    %209 = vector.multi_reduction <add>, %208, %cst_185 [0] : vector<6x128xf32> to vector<128xf32>
    %210 = vector.shape_cast %209 : vector<128xf32> to vector<1x128xf32>
    %211 = arith.addf %137, %210 : vector<1x128xf32>
    %cst_186 = arith.constant dense<0xFF800000> : vector<128xf32>
    %212 = vector.multi_reduction <maximumf>, %208, %cst_186 [0] : vector<6x128xf32> to vector<128xf32>
    %213 = vector.shape_cast %212 : vector<128xf32> to vector<1x128xf32>
    %214 = arith.maximumf %140, %213 : vector<1x128xf32>
    %215 = tpu.concatenate %204, %211 in 0 : vector<1x128xf32>, vector<1x128xf32> -> vector<2x128xf32>
    %cst_187 = arith.constant 6.250000e-02 : f32
    %216 = vector.broadcast %cst_187 : f32 to vector<2x128xf32>
    %217 = arith.mulf %215, %216 : vector<2x128xf32>
    %218 = tpu.concatenate %207, %214 in 0 : vector<1x128xf32>, vector<1x128xf32> -> vector<2x128xf32>
    %219 = arith.addf %217, %218 : vector<2x128xf32>
    %c0_188 = arith.constant 0 : index
    %c0_189 = arith.constant 0 : index
    %220 = vector.load %arg19[%c0_188, %c0_189] : memref<2x128xf32, #tpu.memory_space<vmem>>, vector<2x128xf32>
    tpu.vector_store %arg19[%c0_188, %c0_189], %219 {strides = array<i32>} : memref<2x128xf32, #tpu.memory_space<vmem>>, vector<2x128xf32>,
    return
  }
  func.func @transform_0(%arg0: i32) -> (i32, i32) {
    %c0_i32 = arith.constant 0 : i32
    %c0_i32_0 = arith.constant 0 : i32
    %c0_i32_1 = arith.constant 0 : i32
    return %c0_i32, %c0_i32_0 : i32, i32
  }
  func.func @transform_1(%arg0: i32) -> (i32, i32, i32) {
    %c0_i32 = arith.constant 0 : i32
    %c0_i32_0 = arith.constant 0 : i32
    %c0_i32_1 = arith.constant 0 : i32
    %c0_i32_2 = arith.constant 0 : i32
    return %c0_i32, %c0_i32_0, %c0_i32_1 : i32, i32, i32
  }
  func.func @transform_2(%arg0: i32) -> (i32, i32, i32) {
    %c0_i32 = arith.constant 0 : i32
    %c0_i32_0 = arith.constant 0 : i32
    %c0_i32_1 = arith.constant 0 : i32
    %c0_i32_2 = arith.constant 0 : i32
    return %c0_i32, %c0_i32_0, %c0_i32_1 : i32, i32, i32
  }
  func.func @transform_3(%arg0: i32) -> (i32, i32) {
    %c0_i32 = arith.constant 0 : i32
    %c0_i32_0 = arith.constant 0 : i32
    %c0_i32_1 = arith.constant 0 : i32
    return %c0_i32, %c0_i32_0 : i32, i32
  }
  func.func @transform_4(%arg0: i32) -> (i32, i32) {
    %c0_i32 = arith.constant 0 : i32
    %c0_i32_0 = arith.constant 0 : i32
    %c0_i32_1 = arith.constant 0 : i32
    return %c0_i32, %c0_i32_0 : i32, i32
  }
  func.func @transform_5(%arg0: i32) -> (i32, i32, i32) {
    %c0_i32 = arith.constant 0 : i32
    %c0_i32_0 = arith.constant 0 : i32
    %c0_i32_1 = arith.constant 0 : i32
    %c0_i32_2 = arith.constant 0 : i32
    return %c0_i32, %c0_i32_0, %c0_i32_1 : i32, i32, i32
  }
  func.func @transform_6(%arg0: i32) -> (i32, i32, i32) {
    %c0_i32 = arith.constant 0 : i32
    %c0_i32_0 = arith.constant 0 : i32
    %c0_i32_1 = arith.constant 0 : i32
    %c0_i32_2 = arith.constant 0 : i32
    return %c0_i32, %c0_i32_0, %c0_i32_1 : i32, i32, i32
  }
  func.func @transform_7(%arg0: i32) -> (i32, i32) {
    %c0_i32 = arith.constant 0 : i32
    %c0_i32_0 = arith.constant 0 : i32
    %c0_i32_1 = arith.constant 0 : i32
    return %c0_i32, %c0_i32_0 : i32, i32
  }
  func.func @transform_8(%arg0: i32) -> (i32, i32) {
    %c0_i32 = arith.constant 0 : i32
    %c0_i32_0 = arith.constant 0 : i32
    %c0_i32_1 = arith.constant 0 : i32
    return %c0_i32, %c0_i32_0 : i32, i32
  }
  func.func @transform_9(%arg0: i32) -> (i32, i32, i32) {
    %c0_i32 = arith.constant 0 : i32
    %c0_i32_0 = arith.constant 0 : i32
    %c0_i32_1 = arith.constant 0 : i32
    %c0_i32_2 = arith.constant 0 : i32
    return %c0_i32, %c0_i32_0, %c0_i32_1 : i32, i32, i32
  }
  func.func @transform_10(%arg0: i32) -> (i32, i32, i32) {
    %c0_i32 = arith.constant 0 : i32
    %c0_i32_0 = arith.constant 0 : i32
    %c0_i32_1 = arith.constant 0 : i32
    %c0_i32_2 = arith.constant 0 : i32
    return %c0_i32, %c0_i32_0, %c0_i32_1 : i32, i32, i32
  }
  func.func @transform_11(%arg0: i32) -> (i32, i32) {
    %c0_i32 = arith.constant 0 : i32
    %c0_i32_0 = arith.constant 0 : i32
    %c0_i32_1 = arith.constant 0 : i32
    return %c0_i32, %c0_i32_0 : i32, i32
  }
  func.func @transform_12(%arg0: i32) -> (i32, i32) {
    %c0_i32 = arith.constant 0 : i32
    %c0_i32_0 = arith.constant 0 : i32
    %c0_i32_1 = arith.constant 0 : i32
    return %c0_i32, %c0_i32_0 : i32, i32
  }
  func.func @transform_13(%arg0: i32) -> (i32, i32, i32) {
    %c0_i32 = arith.constant 0 : i32
    %c0_i32_0 = arith.constant 0 : i32
    %c0_i32_1 = arith.constant 0 : i32
    %c0_i32_2 = arith.constant 0 : i32
    return %c0_i32, %c0_i32_0, %c0_i32_1 : i32, i32, i32
  }
  func.func @transform_14(%arg0: i32) -> (i32, i32, i32) {
    %c0_i32 = arith.constant 0 : i32
    %c0_i32_0 = arith.constant 0 : i32
    %c0_i32_1 = arith.constant 0 : i32
    %c0_i32_2 = arith.constant 0 : i32
    return %c0_i32, %c0_i32_0, %c0_i32_1 : i32, i32, i32
  }
  func.func @transform_15(%arg0: i32) -> (i32, i32) {
    %c0_i32 = arith.constant 0 : i32
    %c0_i32_0 = arith.constant 0 : i32
    %c0_i32_1 = arith.constant 0 : i32
    return %c0_i32, %c0_i32_0 : i32, i32
  }
  func.func @transform_16(%arg0: i32) -> (i32, i32) {
    %c0_i32 = arith.constant 0 : i32
    %c0_i32_0 = arith.constant 0 : i32
    %c0_i32_1 = arith.constant 0 : i32
    return %c0_i32, %c0_i32_0 : i32, i32
  }
  func.func @transform_17(%arg0: i32) -> (i32, i32) {
    %c0_i32 = arith.constant 0 : i32
    %c0_i32_0 = arith.constant 0 : i32
    %c0_i32_1 = arith.constant 0 : i32
    return %c0_i32, %c0_i32_0 : i32, i32
  }
  func.func @transform_18(%arg0: i32) -> (i32, i32) {
    %c0_i32 = arith.constant 0 : i32
    %c0_i32_0 = arith.constant 0 : i32
    %c0_i32_1 = arith.constant 0 : i32
    return %c0_i32, %c0_i32_0 : i32, i32
  }
}

</mosaic_0001>

<llo_original>
// kernel: tpu_custom_call.1
$region0: #{tpu_custom_call.1}
  #allocation0 [shape = 'u32[]', space=smem, size = 0x4, offset = 0x4, fixed_abs, tag = 'smem constant byte address 0x4 - core index']
  #allocation1 [shape = 'u32[72,128]{1,0:T(1,128)}', space=vmem, size = 0x9000, scoped, tag = 'internal scratch']
  %s0 = inlined_call_operand.vmem [shape: f32[32,4], index: 0, kind: input, shape index: {}]
  %s1 = inlined_call_operand.vmem [shape: f32[3,32,32], index: 1, kind: input, shape index: {}]
  %s2 = inlined_call_operand.vmem [shape: f32[3,4,96], index: 2, kind: input, shape index: {}]
  %s3 = inlined_call_operand.vmem [shape: f32[1,96], index: 3, kind: input, shape index: {}]
  %s4 = inlined_call_operand.vmem [shape: f32[1,96], index: 4, kind: input, shape index: {}]
  %s5 = inlined_call_operand.vmem [shape: f32[3,10,32], index: 5, kind: input, shape index: {}]
  %s6 = inlined_call_operand.vmem [shape: f32[3,96,32], index: 6, kind: input, shape index: {}]
  %s7 = inlined_call_operand.vmem [shape: f32[1,32], index: 7, kind: input, shape index: {}]
  %s8 = inlined_call_operand.vmem [shape: f32[1,32], index: 8, kind: input, shape index: {}]
  %s9 = inlined_call_operand.vmem [shape: f32[5,10,32], index: 9, kind: input, shape index: {}]
  %s10 = inlined_call_operand.vmem [shape: f32[5,96,32], index: 10, kind: input, shape index: {}]
  %s11 = inlined_call_operand.vmem [shape: f32[1,32], index: 11, kind: input, shape index: {}]
  %s12 = inlined_call_operand.vmem [shape: f32[1,32], index: 12, kind: input, shape index: {}]
  %s13 = inlined_call_operand.vmem [shape: f32[7,12,32], index: 13, kind: input, shape index: {}]
  %s14 = inlined_call_operand.vmem [shape: f32[7,96,32], index: 14, kind: input, shape index: {}]
  %s15 = inlined_call_operand.vmem [shape: f32[1,32], index: 15, kind: input, shape index: {}]
  %s16 = inlined_call_operand.vmem [shape: f32[1,32], index: 16, kind: input, shape index: {}]
  %s17 = inlined_call_operand.vmem [shape: f32[32,128], index: 17, kind: input, shape index: {}]
  %s18 = inlined_call_operand.hbm [shape: f32[2,128], index: 18, kind: output, shape index: {}]
  %s19 = sld [smem:[#allocation0]]
  $region82: #{tpu_custom_call.1} parent=0
    _
  %s21 = ssub.s32 1, %s19
  %s22 = scalar_select 0, %s21, %s19
  $region1: #{tpu_custom_call.1} parent=0
    #allocation2 [shape = 'u8[1024]{0}', space=vmem, size = 0x400, scoped, tag = 'output window, operand 0, single buffered']
    #allocation3 [shape = 's32[1]{0}', space=sflag, size = 0x4, scoped, tag = 'scoped memory for tpu_custom_call.1']
    %23 = vsyncpa [#allocation3], 0
    // Predicated region
    $region2: #{tpu_custom_call.1} parent=1 // pred_check
      _
    $region3: #{tpu_custom_call.1} parent=1 // pred_check_branch
      %25 = sbr.rel (0) target = $region5
    $region4: #{tpu_custom_call.1} parent=1 // pred_region
      _
    $region5: #{tpu_custom_call.1} parent=1 // pred_fallthru
      _
    // Predicated region
    $region6: #{tpu_custom_call.1} parent=1 // pred_check
      _
    $region7: #{tpu_custom_call.1} parent=1 // pred_check_branch
      %27 = sbr.rel (0) target = $region9
    $region8: #{tpu_custom_call.1} parent=1 // pred_region
      _
    $region9: #{tpu_custom_call.1} parent=1 // pred_fallthru
      _
    // Predicated region
    $region10: #{tpu_custom_call.1} parent=1 // pred_check
      _
    $region11: #{tpu_custom_call.1} parent=1 // pred_check_branch
      %29 = sbr.rel (0) target = $region13
    $region12: #{tpu_custom_call.1} parent=1 // pred_region
      _
    $region13: #{tpu_custom_call.1} parent=1 // pred_fallthru
      _
    // Predicated region
    $region14: #{tpu_custom_call.1} parent=1 // pred_check
      _
    $region15: #{tpu_custom_call.1} parent=1 // pred_check_branch
      %31 = sbr.rel (0) target = $region17
    $region16: #{tpu_custom_call.1} parent=1 // pred_region
      _
    $region17: #{tpu_custom_call.1} parent=1 // pred_fallthru
      _
    // Predicated region
    $region18: #{tpu_custom_call.1} parent=1 // pred_check
      _
    $region19: #{tpu_custom_call.1} parent=1 // pred_check_branch
      %33 = sbr.rel (0) target = $region21
    $region20: #{tpu_custom_call.1} parent=1 // pred_region
      _
    $region21: #{tpu_custom_call.1} parent=1 // pred_fallthru
      _
    // Predicated region
    $region22: #{tpu_custom_call.1} parent=1 // pred_check
      _
    $region23: #{tpu_custom_call.1} parent=1 // pred_check_branch
      %35 = sbr.rel (0) target = $region25
    $region24: #{tpu_custom_call.1} parent=1 // pred_region
      _
    $region25: #{tpu_custom_call.1} parent=1 // pred_fallthru
      _
    // Predicated region
    $region26: #{tpu_custom_call.1} parent=1 // pred_check
      _
    $region27: #{tpu_custom_call.1} parent=1 // pred_check_branch
      %37 = sbr.rel (0) target = $region29
    $region28: #{tpu_custom_call.1} parent=1 // pred_region
      _
    $region29: #{tpu_custom_call.1} parent=1 // pred_fallthru
      _
    // Predicated region
    $region30: #{tpu_custom_call.1} parent=1 // pred_check
      _
    $region31: #{tpu_custom_call.1} parent=1 // pred_check_branch
      %39 = sbr.rel (0) target = $region33
    $region32: #{tpu_custom_call.1} parent=1 // pred_region
      _
    $region33: #{tpu_custom_call.1} parent=1 // pred_fallthru
      _
    // Predicated region
    $region34: #{tpu_custom_call.1} parent=1 // pred_check
      _
    $region35: #{tpu_custom_call.1} parent=1 // pred_check_branch
      %41 = sbr.rel (0) target = $region37
    $region36: #{tpu_custom_call.1} parent=1 // pred_region
      _
    $region37: #{tpu_custom_call.1} parent=1 // pred_fallthru
      _
    // Predicated region
    $region38: #{tpu_custom_call.1} parent=1 // pred_check
      _
    $region39: #{tpu_custom_call.1} parent=1 // pred_check_branch
      %43 = sbr.rel (0) target = $region41
    $region40: #{tpu_custom_call.1} parent=1 // pred_region
      _
    $region41: #{tpu_custom_call.1} parent=1 // pred_fallthru
      _
    // Predicated region
    $region42: #{tpu_custom_call.1} parent=1 // pred_check
      _
    $region43: #{tpu_custom_call.1} parent=1 // pred_check_branch
      %45 = sbr.rel (0) target = $region45
    $region44: #{tpu_custom_call.1} parent=1 // pred_region
      _
    $region45: #{tpu_custom_call.1} parent=1 // pred_fallthru
      _
    // Predicated region
    $region46: #{tpu_custom_call.1} parent=1 // pred_check
      _
    $region47: #{tpu_custom_call.1} parent=1 // pred_check_branch
      %47 = sbr.rel (0) target = $region49
    $region48: #{tpu_custom_call.1} parent=1 // pred_region
      _
    $region49: #{tpu_custom_call.1} parent=1 // pred_fallthru
      _
    // Predicated region
    $region50: #{tpu_custom_call.1} parent=1 // pred_check
      _
    $region51: #{tpu_custom_call.1} parent=1 // pred_check_branch
      %49 = sbr.rel (0) target = $region53
    $region52: #{tpu_custom_call.1} parent=1 // pred_region
      _
    $region53: #{tpu_custom_call.1} parent=1 // pred_fallthru
      _
    // Predicated region
    $region54: #{tpu_custom_call.1} parent=1 // pred_check
      _
    $region55: #{tpu_custom_call.1} parent=1 // pred_check_branch
      %51 = sbr.rel (0) target = $region57
    $region56: #{tpu_custom_call.1} parent=1 // pred_region
      _
    $region57: #{tpu_custom_call.1} parent=1 // pred_fallthru
      _
    // Predicated region
    $region58: #{tpu_custom_call.1} parent=1 // pred_check
      _
    $region59: #{tpu_custom_call.1} parent=1 // pred_check_branch
      %53 = sbr.rel (0) target = $region61
    $region60: #{tpu_custom_call.1} parent=1 // pred_region
      _
    $region61: #{tpu_custom_call.1} parent=1 // pred_fallthru
      _
    // Predicated region
    $region62: #{tpu_custom_call.1} parent=1 // pred_check
      _
    $region63: #{tpu_custom_call.1} parent=1 // pred_check_branch
      %55 = sbr.rel (0) target = $region65
    $region64: #{tpu_custom_call.1} parent=1 // pred_region
      _
    $region65: #{tpu_custom_call.1} parent=1 // pred_fallthru
      _
    // Predicated region
    $region66: #{tpu_custom_call.1} parent=1 // pred_check
      _
    $region67: #{tpu_custom_call.1} parent=1 // pred_check_branch
      %57 = sbr.rel (0) target = $region69
    $region68: #{tpu_custom_call.1} parent=1 // pred_region
      _
    $region69: #{tpu_custom_call.1} parent=1 // pred_fallthru
      _
    // Predicated region
    $region70: #{tpu_custom_call.1} parent=1 // pred_check
      _
    $region71: #{tpu_custom_call.1} parent=1 // pred_check_branch
      %59 = sbr.rel (0) target = $region73
    $region72: #{tpu_custom_call.1} parent=1 // pred_region
      _
    $region73: #{tpu_custom_call.1} parent=1 // pred_fallthru
      _
    %v60 = vld [vmem:[%s0] sm:$0xff]
    %v61 = vld [vmem:[%s0 + $0x8] sm:$0xff]
    %v62 = vld [vmem:[%s0 + $0x10] sm:$0xff]
    %v63 = vld [vmem:[%s0 + $0x18] sm:$0xff]
    %v64 = vld [vmem:[%s1] sm:$0xff]
    %v65 = vld [vmem:[%s1 + $0x8] sm:$0xff]
    %v66 = vld [vmem:[%s1 + $0x10] sm:$0xff]
    %v67 = vld [vmem:[%s1 + $0x18] sm:$0xff]
    %vm68 = vcmask 261120
    %v70 = vsel %vm68, %v64, 0
    %v73 = vsel %vm68, %v65, 0
    %v76 = vsel %vm68, %v66, 0
    %v79 = vsel %vm68, %v67, 0
    %81 = vmatpush.msra.mxu0 0.0
    %82 = vmatpush.msra.mxu0 0.0
    %83 = vmatpush.msra.mxu0 0.0
    %84 = vmatpush.msra.mxu0 0.0
    %85 = vmatpush.msra.mxu0 0.0
    %86 = vmatpush.msra.mxu0 0.0
    %87 = vmatpush.msra.mxu0 0.0
    %88 = vmatpush.msra.mxu0 0.0
    %89 = vmatpush.msra.mxu0 0.0
    %90 = vmatpush.msra.mxu0 0.0
    %91 = vmatpush.msra.mxu0 0.0
    %92 = vmatpush.msra.mxu0 0.0
    %93 = vmatpush.msra.mxu0 %v63
    %94 = vmatpush.msra.mxu0 %v62
    %95 = vmatpush.msra.mxu0 %v61
    %96 = vmatpush.msra.mxu0 %v60
    %97 = vmatmul.f32.gmra.mxu0 %v70
    %v98 = vpop.f32.mrf.mxu0
    %v99 = vadd.f32 0.0, %v98
    %100 = vmatmul.f32.gmra.mxu0 %v73
    %v101 = vpop.f32.mrf.mxu0
    %v102 = vadd.f32 0.0, %v101
    %103 = vmatmul.f32.gmra.mxu0 %v76
    %v104 = vpop.f32.mrf.mxu0
    %v105 = vadd.f32 0.0, %v104
    %106 = vmatmul.f32.gmra.mxu0 %v79
    %v107 = vpop.f32.mrf.mxu0
    %v108 = vadd.f32 0.0, %v107
    %109 = vdwg.mxu0
    %v110 = vld [vmem:[%s2] sm:$0xf]
    %s111 = scalar_lea.vmem %s1, 32
    %v112 = vld [vmem:[%s111] sm:$0xff]
    %v113 = vld [vmem:[%s111 + $0x8] sm:$0xff]
    %v114 = vld [vmem:[%s111 + $0x10] sm:$0xff]
    %v115 = vld [vmem:[%s111 + $0x18] sm:$0xff]
    %v117 = vsel %vm68, %v112, 0
    %v120 = vsel %vm68, %v113, 0
    %v123 = vsel %vm68, %v114, 0
    %v126 = vsel %vm68, %v115, 0
    %128 = vmatpush.msra.mxu0 0.0
    %129 = vmatpush.msra.mxu0 0.0
    %130 = vmatpush.msra.mxu0 0.0
    %131 = vmatpush.msra.mxu0 0.0
    %132 = vmatpush.msra.mxu0 0.0
    %133 = vmatpush.msra.mxu0 0.0
    %134 = vmatpush.msra.mxu0 0.0
    %135 = vmatpush.msra.mxu0 0.0
    %136 = vmatpush.msra.mxu0 0.0
    %137 = vmatpush.msra.mxu0 0.0
    %138 = vmatpush.msra.mxu0 0.0
    %139 = vmatpush.msra.mxu0 0.0
    %140 = vmatpush.msra.mxu0 %v63
    %141 = vmatpush.msra.mxu0 %v62
    %142 = vmatpush.msra.mxu0 %v61
    %143 = vmatpush.msra.mxu0 %v60
    %144 = vmatmul.f32.gmra.mxu0 %v117
    %v145 = vpop.f32.mrf.mxu0
    %v146 = vadd.f32 0.0, %v145
    %147 = vmatmul.f32.gmra.mxu0 %v120
    %v148 = vpop.f32.mrf.mxu0
    %v149 = vadd.f32 0.0, %v148
    %150 = vmatmul.f32.gmra.mxu0 %v123
    %v151 = vpop.f32.mrf.mxu0
    %v152 = vadd.f32 0.0, %v151
    %153 = vmatmul.f32.gmra.mxu0 %v126
    %v154 = vpop.f32.mrf.mxu0
    %v155 = vadd.f32 0.0, %v154
    %156 = vdwg.mxu0
    %s157 = scalar_lea.vmem %s2, 4
    %v158 = vld [vmem:[%s157] sm:$0xf]
    %vm159 = vcmask 31744
    %v161 = vsel %vm159, %v146, 0
    %v164 = vsel %vm159, %v149, 0
    %v167 = vsel %vm159, %v152, 0
    %v170 = vsel %vm159, %v155, 0
    %vm172 = vcmask 1043456
    %v174 = vsel %vm172, %v158, 0
    %176 = vmatpush.msra.mxu0 0.0
    %177 = vmatpush.msra.mxu0 0.0
    %178 = vmatpush.msra.mxu0 0.0
    %179 = vmatpush.msra.mxu0 0.0
    %180 = vmatpush.msra.mxu0 0.0
    %181 = vmatpush.msra.mxu0 0.0
    %182 = vmatpush.msra.mxu0 0.0
    %183 = vmatpush.msra.mxu0 0.0
    %184 = vmatpush.msra.mxu0 0.0
    %185 = vmatpush.msra.mxu0 0.0
    %186 = vmatpush.msra.mxu0 0.0
    %187 = vmatpush.msra.mxu0 0.0
    %188 = vmatpush.msra.mxu0 0.0
    %189 = vmatpush.msra.mxu0 0.0
    %190 = vmatpush.msra.mxu0 0.0
    %191 = vmatpush.msra.mxu0 %v174
    %192 = vmatmul.f32.gmra.mxu0 %v161
    %v193 = vpop.f32.mrf.mxu0
    %v194 = vadd.f32 0.0, %v193
    %195 = vmatmul.f32.gmra.mxu0 %v164
    %v196 = vpop.f32.mrf.mxu0
    %v197 = vadd.f32 0.0, %v196
    %198 = vmatmul.f32.gmra.mxu0 %v167
    %v199 = vpop.f32.mrf.mxu0
    %v200 = vadd.f32 0.0, %v199
    %201 = vmatmul.f32.gmra.mxu0 %v170
    %v202 = vpop.f32.mrf.mxu0
    %v203 = vadd.f32 0.0, %v202
    %204 = vdwg.mxu0
    %v206 = vsel %vm159, %v99, 0
    %v209 = vsel %vm159, %v102, 0
    %v212 = vsel %vm159, %v105, 0
    %v215 = vsel %vm159, %v108, 0
    %v218 = vsel %vm172, %v110, 0
    %220 = vmatpush.msra.mxu0 0.0
    %221 = vmatpush.msra.mxu0 0.0
    %222 = vmatpush.msra.mxu0 0.0
    %223 = vmatpush.msra.mxu0 0.0
    %224 = vmatpush.msra.mxu0 0.0
    %225 = vmatpush.msra.mxu0 0.0
    %226 = vmatpush.msra.mxu0 0.0
    %227 = vmatpush.msra.mxu0 0.0
    %228 = vmatpush.msra.mxu0 0.0
    %229 = vmatpush.msra.mxu0 0.0
    %230 = vmatpush.msra.mxu0 0.0
    %231 = vmatpush.msra.mxu0 0.0
    %232 = vmatpush.msra.mxu0 0.0
    %233 = vmatpush.msra.mxu0 0.0
    %234 = vmatpush.msra.mxu0 0.0
    %235 = vmatpush.msra.mxu0 %v218
    %236 = vmatmul.f32.gmra.mxu0 %v206
    %v237 = vpop.f32.mrf.mxu0
    %v238 = vadd.f32 %v194, %v237
    %239 = vmatmul.f32.gmra.mxu0 %v209
    %v240 = vpop.f32.mrf.mxu0
    %v241 = vadd.f32 %v197, %v240
    %242 = vmatmul.f32.gmra.mxu0 %v212
    %v243 = vpop.f32.mrf.mxu0
    %v244 = vadd.f32 %v200, %v243
    %245 = vmatmul.f32.gmra.mxu0 %v215
    %v246 = vpop.f32.mrf.mxu0
    %v247 = vadd.f32 %v203, %v246
    %248 = vdwg.mxu0
    %s249 = scalar_lea.vmem %s1, 64
    %v250 = vld [vmem:[%s249] sm:$0xff]
    %v251 = vld [vmem:[%s249 + $0x8] sm:$0xff]
    %v252 = vld [vmem:[%s249 + $0x10] sm:$0xff]
    %v253 = vld [vmem:[%s249 + $0x18] sm:$0xff]
    %v255 = vsel %vm68, %v250, 0
    %v258 = vsel %vm68, %v251, 0
    %v261 = vsel %vm68, %v252, 0
    %v264 = vsel %vm68, %v253, 0
    %266 = vmatpush.msra.mxu0 0.0
    %267 = vmatpush.msra.mxu0 0.0
    %268 = vmatpush.msra.mxu0 0.0
    %269 = vmatpush.msra.mxu0 0.0
    %270 = vmatpush.msra.mxu0 0.0
    %271 = vmatpush.msra.mxu0 0.0
    %272 = vmatpush.msra.mxu0 0.0
    %273 = vmatpush.msra.mxu0 0.0
    %274 = vmatpush.msra.mxu0 0.0
    %275 = vmatpush.msra.mxu0 0.0
    %276 = vmatpush.msra.mxu0 0.0
    %277 = vmatpush.msra.mxu0 0.0
    %278 = vmatpush.msra.mxu0 %v63
    %279 = vmatpush.msra.mxu0 %v62
    %280 = vmatpush.msra.mxu0 %v61
    %281 = vmatpush.msra.mxu0 %v60
    %282 = vmatmul.f32.gmra.mxu0 %v255
    %v283 = vpop.f32.mrf.mxu0
    %v284 = vadd.f32 0.0, %v283
    %285 = vmatmul.f32.gmra.mxu0 %v258
    %v286 = vpop.f32.mrf.mxu0
    %v287 = vadd.f32 0.0, %v286
    %288 = vmatmul.f32.gmra.mxu0 %v261
    %v289 = vpop.f32.mrf.mxu0
    %v290 = vadd.f32 0.0, %v289
    %291 = vmatmul.f32.gmra.mxu0 %v264
    %v292 = vpop.f32.mrf.mxu0
    %v293 = vadd.f32 0.0, %v292
    %294 = vdwg.mxu0
    %s295 = scalar_lea.vmem %s2, 8
    %v296 = vld [vmem:[%s295] sm:$0xf]
    %v298 = vsel %vm159, %v284, 0
    %v301 = vsel %vm159, %v287, 0
    %v304 = vsel %vm159, %v290, 0
    %v307 = vsel %vm159, %v293, 0
    %v310 = vsel %vm172, %v296, 0
    %312 = vmatpush.msra.mxu0 0.0
    %313 = vmatpush.msra.mxu0 0.0
    %314 = vmatpush.msra.mxu0 0.0
    %315 = vmatpush.msra.mxu0 0.0
    %316 = vmatpush.msra.mxu0 0.0
    %317 = vmatpush.msra.mxu0 0.0
    %318 = vmatpush.msra.mxu0 0.0
    %319 = vmatpush.msra.mxu0 0.0
    %320 = vmatpush.msra.mxu0 0.0
    %321 = vmatpush.msra.mxu0 0.0
    %322 = vmatpush.msra.mxu0 0.0
    %323 = vmatpush.msra.mxu0 0.0
    %324 = vmatpush.msra.mxu0 0.0
    %325 = vmatpush.msra.mxu0 0.0
    %326 = vmatpush.msra.mxu0 0.0
    %327 = vmatpush.msra.mxu0 %v310
    %328 = vmatmul.f32.gmra.mxu0 %v298
    %v329 = vpop.f32.mrf.mxu0
    %v330 = vadd.f32 0.0, %v329
    %331 = vmatmul.f32.gmra.mxu0 %v301
    %v332 = vpop.f32.mrf.mxu0
    %v333 = vadd.f32 0.0, %v332
    %334 = vmatmul.f32.gmra.mxu0 %v304
    %v335 = vpop.f32.mrf.mxu0
    %v336 = vadd.f32 0.0, %v335
    %337 = vmatmul.f32.gmra.mxu0 %v307
    %v338 = vpop.f32.mrf.mxu0
    %v339 = vadd.f32 0.0, %v338
    %340 = vdwg.mxu0
    %v341 = vadd.f32 %v238, %v330
    %v342 = vadd.f32 %v241, %v333
    %v343 = vadd.f32 %v244, %v336
    %v344 = vadd.f32 %v247, %v339
    %v345 = vld [vmem:[%s3] sm:$0x1]
    %v347 = vperm.slane %v345, 0
    %v349 = vmul.f32 %v341, %v347
    %v350 = vmul.f32 %v342, %v347
    %v351 = vmul.f32 %v343, %v347
    %v352 = vmul.f32 %v344, %v347
    %v353 = vld [vmem:[%s4] sm:$0x1]
    %v355 = vperm.slane %v353, 0
    %v357 = vadd.f32 %v349, %v355
    %v358 = vadd.f32 %v350, %v355
    %v359 = vadd.f32 %v351, %v355
    %v360 = vadd.f32 %v352, %v355
    %v361 = vmax.f32 %v357, 0.0
    %v362 = vmax.f32 %v358, 0.0
    %v363 = vmax.f32 %v359, 0.0
    %v364 = vmax.f32 %v360, 0.0
    %v365 = vld [vmem:[%s5] sm:$0xff]
    %v366 = vld [vmem:[%s5 + $0x8] sm:$0x3]
    %v368 = vsel %vm68, %v365, 0
    %v371 = vsel %vm68, %v366, 0
    %373 = vmatpush.msra.mxu0 0.0
    %374 = vmatpush.msra.mxu0 0.0
    %375 = vmatpush.msra.mxu0 0.0
    %376 = vmatpush.msra.mxu0 0.0
    %377 = vmatpush.msra.mxu0 0.0
    %378 = vmatpush.msra.mxu0 0.0
    %379 = vmatpush.msra.mxu0 0.0
    %380 = vmatpush.msra.mxu0 0.0
    %381 = vmatpush.msra.mxu0 0.0
    %382 = vmatpush.msra.mxu0 0.0
    %383 = vmatpush.msra.mxu0 0.0
    %384 = vmatpush.msra.mxu0 0.0
    %385 = vmatpush.msra.mxu0 %v364
    %386 = vmatpush.msra.mxu0 %v363
    %387 = vmatpush.msra.mxu0 %v362
    %388 = vmatpush.msra.mxu0 %v361
    %389 = vmatmul.f32.gmra.mxu0 %v368
    %v390 = vpop.f32.mrf.mxu0
    %v391 = vadd.f32 0.0, %v390
    %392 = vmatmul.f32.gmra.mxu0 %v371
    %v393 = vpop.f32.mrf.mxu0
    %v394 = vadd.f32 0.0, %v393
    %395 = vdwg.mxu0
    %v396 = vld [vmem:[%s6] sm:$0xff]
    %v397 = vld [vmem:[%s6 + $0x8] sm:$0xff]
    %v398 = vld [vmem:[%s6 + $0x10] sm:$0xff]
    %v399 = vld [vmem:[%s6 + $0x18] sm:$0xff]
    %v400 = vld [vmem:[%s6 + $0x20] sm:$0xff]
    %v401 = vld [vmem:[%s6 + $0x28] sm:$0xff]
    %v402 = vld [vmem:[%s6 + $0x30] sm:$0xff]
    %v403 = vld [vmem:[%s6 + $0x38] sm:$0xff]
    %v404 = vld [vmem:[%s6 + $0x40] sm:$0xff]
    %v405 = vld [vmem:[%s6 + $0x48] sm:$0xff]
    %v406 = vld [vmem:[%s6 + $0x50] sm:$0xff]
    %v407 = vld [vmem:[%s6 + $0x58] sm:$0xff]
    %s408 = scalar_lea.vmem %s5, 16
    %v409 = vld [vmem:[%s408] sm:$0xff]
    %v410 = vld [vmem:[%s408 + $0x8] sm:$0x3]
    %v412 = vsel %vm68, %v409, 0
    %v415 = vsel %vm68, %v410, 0
    %417 = vmatpush.msra.mxu0 0.0
    %418 = vmatpush.msra.mxu0 0.0
    %419 = vmatpush.msra.mxu0 0.0
    %420 = vmatpush.msra.mxu0 0.0
    %421 = vmatpush.msra.mxu0 0.0
    %422 = vmatpush.msra.mxu0 0.0
    %423 = vmatpush.msra.mxu0 0.0
    %424 = vmatpush.msra.mxu0 0.0
    %425 = vmatpush.msra.mxu0 0.0
    %426 = vmatpush.msra.mxu0 0.0
    %427 = vmatpush.msra.mxu0 0.0
    %428 = vmatpush.msra.mxu0 0.0
    %429 = vmatpush.msra.mxu0 %v364
    %430 = vmatpush.msra.mxu0 %v363
    %431 = vmatpush.msra.mxu0 %v362
    %432 = vmatpush.msra.mxu0 %v361
    %433 = vmatmul.f32.gmra.mxu0 %v412
    %v434 = vpop.f32.mrf.mxu0
    %v435 = vadd.f32 0.0, %v434
    %436 = vmatmul.f32.gmra.mxu0 %v415
    %v437 = vpop.f32.mrf.mxu0
    %v438 = vadd.f32 0.0, %v437
    %439 = vdwg.mxu0
    %s440 = scalar_lea.vmem %s6, 96
    %v441 = vld [vmem:[%s440] sm:$0xff]
    %v442 = vld [vmem:[%s440 + $0x8] sm:$0xff]
    %v443 = vld [vmem:[%s440 + $0x10] sm:$0xff]
    %v444 = vld [vmem:[%s440 + $0x18] sm:$0xff]
    %v445 = vld [vmem:[%s440 + $0x20] sm:$0xff]
    %v446 = vld [vmem:[%s440 + $0x28] sm:$0xff]
    %v447 = vld [vmem:[%s440 + $0x30] sm:$0xff]
    %v448 = vld [vmem:[%s440 + $0x38] sm:$0xff]
    %v449 = vld [vmem:[%s440 + $0x40] sm:$0xff]
    %v450 = vld [vmem:[%s440 + $0x48] sm:$0xff]
    %v451 = vld [vmem:[%s440 + $0x50] sm:$0xff]
    %v452 = vld [vmem:[%s440 + $0x58] sm:$0xff]
    %vm453 = vcmask 785408
    %v455 = vsel %vm453, %v435, 0
    %v458 = vsel %vm453, %v438, 0
    %460 = vmatpush.msra.mxu0 0.0
    %461 = vmatpush.msra.mxu0 0.0
    %462 = vmatpush.msra.mxu0 0.0
    %463 = vmatpush.msra.mxu0 0.0
    %464 = vmatpush.msra.mxu0 %v452
    %465 = vmatpush.msra.mxu0 %v451
    %466 = vmatpush.msra.mxu0 %v450
    %467 = vmatpush.msra.mxu0 %v449
    %468 = vmatpush.msra.mxu0 %v448
    %469 = vmatpush.msra.mxu0 %v447
    %470 = vmatpush.msra.mxu0 %v446
    %471 = vmatpush.msra.mxu0 %v445
    %472 = vmatpush.msra.mxu0 %v444
    %473 = vmatpush.msra.mxu0 %v443
    %474 = vmatpush.msra.mxu0 %v442
    %475 = vmatpush.msra.mxu0 %v441
    %476 = vmatmul.f32.gmra.mxu0 %v455
    %v477 = vpop.f32.mrf.mxu0
    %v478 = vadd.f32 0.0, %v477
    %479 = vmatmul.f32.gmra.mxu0 %v458
    %v480 = vpop.f32.mrf.mxu0
    %v481 = vadd.f32 0.0, %v480
    %482 = vdwg.mxu0
    %v484 = vsel %vm453, %v391, 0
    %v487 = vsel %vm453, %v394, 0
    %489 = vmatpush.msra.mxu0 0.0
    %490 = vmatpush.msra.mxu0 0.0
    %491 = vmatpush.msra.mxu0 0.0
    %492 = vmatpush.msra.mxu0 0.0
    %493 = vmatpush.msra.mxu0 %v407
    %494 = vmatpush.msra.mxu0 %v406
    %495 = vmatpush.msra.mxu0 %v405
    %496 = vmatpush.msra.mxu0 %v404
    %497 = vmatpush.msra.mxu0 %v403
    %498 = vmatpush.msra.mxu0 %v402
    %499 = vmatpush.msra.mxu0 %v401
    %500 = vmatpush.msra.mxu0 %v400
    %501 = vmatpush.msra.mxu0 %v399
    %502 = vmatpush.msra.mxu0 %v398
    %503 = vmatpush.msra.mxu0 %v397
    %504 = vmatpush.msra.mxu0 %v396
    %505 = vmatmul.f32.gmra.mxu0 %v484
    %v506 = vpop.f32.mrf.mxu0
    %v507 = vadd.f32 %v478, %v506
    %508 = vmatmul.f32.gmra.mxu0 %v487
    %v509 = vpop.f32.mrf.mxu0
    %v510 = vadd.f32 %v481, %v509
    %511 = vdwg.mxu0
    %s512 = scalar_lea.vmem %s5, 32
    %v513 = vld [vmem:[%s512] sm:$0xff]
    %v514 = vld [vmem:[%s512 + $0x8] sm:$0x3]
    %v516 = vsel %vm68, %v513, 0
    %v519 = vsel %vm68, %v514, 0
    %521 = vmatpush.msra.mxu0 0.0
    %522 = vmatpush.msra.mxu0 0.0
    %523 = vmatpush.msra.mxu0 0.0
    %524 = vmatpush.msra.mxu0 0.0
    %525 = vmatpush.msra.mxu0 0.0
    %526 = vmatpush.msra.mxu0 0.0
    %527 = vmatpush.msra.mxu0 0.0
    %528 = vmatpush.msra.mxu0 0.0
    %529 = vmatpush.msra.mxu0 0.0
    %530 = vmatpush.msra.mxu0 0.0
    %531 = vmatpush.msra.mxu0 0.0
    %532 = vmatpush.msra.mxu0 0.0
    %533 = vmatpush.msra.mxu0 %v364
    %534 = vmatpush.msra.mxu0 %v363
    %535 = vmatpush.msra.mxu0 %v362
    %536 = vmatpush.msra.mxu0 %v361
    %537 = vmatmul.f32.gmra.mxu0 %v516
    %v538 = vpop.f32.mrf.mxu0
    %v539 = vadd.f32 0.0, %v538
    %540 = vmatmul.f32.gmra.mxu0 %v519
    %v541 = vpop.f32.mrf.mxu0
    %v542 = vadd.f32 0.0, %v541
    %543 = vdwg.mxu0
    %s544 = scalar_lea.vmem %s6, 192
    %v545 = vld [vmem:[%s544] sm:$0xff]
    %v546 = vld [vmem:[%s544 + $0x8] sm:$0xff]
    %v547 = vld [vmem:[%s544 + $0x10] sm:$0xff]
    %v548 = vld [vmem:[%s544 + $0x18] sm:$0xff]
    %v549 = vld [vmem:[%s544 + $0x20] sm:$0xff]
    %v550 = vld [vmem:[%s544 + $0x28] sm:$0xff]
    %v551 = vld [vmem:[%s544 + $0x30] sm:$0xff]
    %v552 = vld [vmem:[%s544 + $0x38] sm:$0xff]
    %v553 = vld [vmem:[%s544 + $0x40] sm:$0xff]
    %v554 = vld [vmem:[%s544 + $0x48] sm:$0xff]
    %v555 = vld [vmem:[%s544 + $0x50] sm:$0xff]
    %v556 = vld [vmem:[%s544 + $0x58] sm:$0xff]
    %v558 = vsel %vm453, %v539, 0
    %v561 = vsel %vm453, %v542, 0
    %563 = vmatpush.msra.mxu0 0.0
    %564 = vmatpush.msra.mxu0 0.0
    %565 = vmatpush.msra.mxu0 0.0
    %566 = vmatpush.msra.mxu0 0.0
    %567 = vmatpush.msra.mxu0 %v556
    %568 = vmatpush.msra.mxu0 %v555
    %569 = vmatpush.msra.mxu0 %v554
    %570 = vmatpush.msra.mxu0 %v553
    %571 = vmatpush.msra.mxu0 %v552
    %572 = vmatpush.msra.mxu0 %v551
    %573 = vmatpush.msra.mxu0 %v550
    %574 = vmatpush.msra.mxu0 %v549
    %575 = vmatpush.msra.mxu0 %v548
    %576 = vmatpush.msra.mxu0 %v547
    %577 = vmatpush.msra.mxu0 %v546
    %578 = vmatpush.msra.mxu0 %v545
    %579 = vmatmul.f32.gmra.mxu0 %v558
    %v580 = vpop.f32.mrf.mxu0
    %v581 = vadd.f32 0.0, %v580
    %582 = vmatmul.f32.gmra.mxu0 %v561
    %v583 = vpop.f32.mrf.mxu0
    %v584 = vadd.f32 0.0, %v583
    %585 = vdwg.mxu0
    %v586 = vadd.f32 %v507, %v581
    %v587 = vadd.f32 %v510, %v584
    %v588 = vld [vmem:[%s7] sm:$0x1]
    %v590 = vperm.slane %v588, 0
    %v592 = vmul.f32 %v586, %v590
    %v593 = vmul.f32 %v587, %v590
    %v594 = vld [vmem:[%s8] sm:$0x1]
    %v596 = vperm.slane %v594, 0
    %v598 = vadd.f32 %v592, %v596
    %v599 = vadd.f32 %v593, %v596
    %v600 = vmax.f32 %v598, 0.0
    %v601 = vmax.f32 %v599, 0.0
    %v602 = vld [vmem:[%s17] sm:$0xff]
    %v603 = vld [vmem:[%s17 + $0x8] sm:$0xff]
    %v604 = vld [vmem:[%s17 + $0x10] sm:$0xff]
    %v605 = vld [vmem:[%s17 + $0x18] sm:$0xff]
    %v607 = vsel %vm68, %v600, 0
    %v610 = vsel %vm68, %v601, 0
    %612 = vmatpush.msra.mxu0 0.0
    %613 = vmatpush.msra.mxu0 0.0
    %614 = vmatpush.msra.mxu0 0.0
    %615 = vmatpush.msra.mxu0 0.0
    %616 = vmatpush.msra.mxu0 0.0
    %617 = vmatpush.msra.mxu0 0.0
    %618 = vmatpush.msra.mxu0 0.0
    %619 = vmatpush.msra.mxu0 0.0
    %620 = vmatpush.msra.mxu0 0.0
    %621 = vmatpush.msra.mxu0 0.0
    %622 = vmatpush.msra.mxu0 0.0
    %623 = vmatpush.msra.mxu0 0.0
    %624 = vmatpush.msra.mxu0 %v605
    %625 = vmatpush.msra.mxu0 %v604
    %626 = vmatpush.msra.mxu0 %v603
    %627 = vmatpush.msra.mxu0 %v602
    %628 = vmatmul.f32.gmra.mxu0 %v607
    %v629 = vpop.f32.mrf.mxu0
    %v630 = vadd.f32 0.0, %v629
    %631 = vmatmul.f32.gmra.mxu0 %v610
    %v632 = vpop.f32.mrf.mxu0
    %v633 = vadd.f32 0.0, %v632
    %634 = vdwg.mxu0
    %vm635 = vcmask 1044480
    %v636 = vsel %vm635, %v630, 0.0
    %v637 = vrot.slane %v636, 4
    %v638 = vadd.f32 %v636, %v637
    %v639 = vrot.slane %v638, 2
    %v640 = vadd.f32 %v638, %v639
    %v641 = vrot.slane %v640, 1
    %v642 = vadd.f32 %v640, %v641
    %v643 = vadd.f32 %v642, 0.0
    %v644 = vsel %vm635, %v630, -inf
    %v645 = vrot.slane %v644, 4
    %v646 = vmax.f32 %v644, %v645
    %v647 = vrot.slane %v646, 2
    %v648 = vmax.f32 %v646, %v647
    %v649 = vrot.slane %v648, 1
    %v650 = vmax.f32 %v648, %v649
    %vm653 = vcmask 1042432
    %v654 = vrot.slane %v630, 5
    %v655 = vrot.slane %v633, 5
    %v656 = vsel %vm653, %v654, %v655
    %v658 = vsel %vm635, %v656, 0.0
    %v659 = vrot.slane %v658, 4
    %v660 = vadd.f32 %v658, %v659
    %v661 = vrot.slane %v660, 2
    %v662 = vadd.f32 %v660, %v661
    %v663 = vrot.slane %v662, 1
    %v664 = vadd.f32 %v662, %v663
    %v665 = vadd.f32 %v664, 0.0
    %vm666 = vcmask 1047557
    %v667 = vsel %vm666, %v630, -inf
    %vm668 = vcmask 1041408
    %v669 = vsel %vm668, %v633, -inf
    %v670 = vmax.f32 %v667, %v669
    %v671 = vrot.slane %v670, 4
    %v672 = vmax.f32 %v670, %v671
    %v673 = vrot.slane %v672, 2
    %v674 = vmax.f32 %v672, %v673
    %v675 = vrot.slane %v674, 1
    %v676 = vmax.f32 %v674, %v675
    %v677 = vld [vmem:[%s9] sm:$0xff]
    %v678 = vld [vmem:[%s9 + $0x8] sm:$0x3]
    %v680 = vsel %vm68, %v677, 0
    %v683 = vsel %vm68, %v678, 0
    %685 = vmatpush.msra.mxu0 0.0
    %686 = vmatpush.msra.mxu0 0.0
    %687 = vmatpush.msra.mxu0 0.0
    %688 = vmatpush.msra.mxu0 0.0
    %689 = vmatpush.msra.mxu0 0.0
    %690 = vmatpush.msra.mxu0 0.0
    %691 = vmatpush.msra.mxu0 0.0
    %692 = vmatpush.msra.mxu0 0.0
    %693 = vmatpush.msra.mxu0 0.0
    %694 = vmatpush.msra.mxu0 0.0
    %695 = vmatpush.msra.mxu0 0.0
    %696 = vmatpush.msra.mxu0 0.0
    %697 = vmatpush.msra.mxu0 %v364
    %698 = vmatpush.msra.mxu0 %v363
    %699 = vmatpush.msra.mxu0 %v362
    %700 = vmatpush.msra.mxu0 %v361
    %701 = vmatmul.f32.gmra.mxu0 %v680
    %v702 = vpop.f32.mrf.mxu0
    %v703 = vadd.f32 0.0, %v702
    %704 = vmatmul.f32.gmra.mxu0 %v683
    %v705 = vpop.f32.mrf.mxu0
    %v706 = vadd.f32 0.0, %v705
    %707 = vdwg.mxu0
    %v708 = vld [vmem:[%s10] sm:$0xff]
    %v709 = vld [vmem:[%s10 + $0x8] sm:$0xff]
    %v710 = vld [vmem:[%s10 + $0x10] sm:$0xff]
    %v711 = vld [vmem:[%s10 + $0x18] sm:$0xff]
    %v712 = vld [vmem:[%s10 + $0x20] sm:$0xff]
    %v713 = vld [vmem:[%s10 + $0x28] sm:$0xff]
    %v714 = vld [vmem:[%s10 + $0x30] sm:$0xff]
    %v715 = vld [vmem:[%s10 + $0x38] sm:$0xff]
    %v716 = vld [vmem:[%s10 + $0x40] sm:$0xff]
    %v717 = vld [vmem:[%s10 + $0x48] sm:$0xff]
    %v718 = vld [vmem:[%s10 + $0x50] sm:$0xff]
    %v719 = vld [vmem:[%s10 + $0x58] sm:$0xff]
    %s720 = scalar_lea.vmem %s9, 16
    %v721 = vld [vmem:[%s720] sm:$0xff]
    %v722 = vld [vmem:[%s720 + $0x8] sm:$0x3]
    %v724 = vsel %vm68, %v721, 0
    %v727 = vsel %vm68, %v722, 0
    %729 = vmatpush.msra.mxu0 0.0
    %730 = vmatpush.msra.mxu0 0.0
    %731 = vmatpush.msra.mxu0 0.0
    %732 = vmatpush.msra.mxu0 0.0
    %733 = vmatpush.msra.mxu0 0.0
    %734 = vmatpush.msra.mxu0 0.0
    %735 = vmatpush.msra.mxu0 0.0
    %736 = vmatpush.msra.mxu0 0.0
    %737 = vmatpush.msra.mxu0 0.0
    %738 = vmatpush.msra.mxu0 0.0
    %739 = vmatpush.msra.mxu0 0.0
    %740 = vmatpush.msra.mxu0 0.0
    %741 = vmatpush.msra.mxu0 %v364
    %742 = vmatpush.msra.mxu0 %v363
    %743 = vmatpush.msra.mxu0 %v362
    %744 = vmatpush.msra.mxu0 %v361
    %745 = vmatmul.f32.gmra.mxu0 %v724
    %v746 = vpop.f32.mrf.mxu0
    %v747 = vadd.f32 0.0, %v746
    %748 = vmatmul.f32.gmra.mxu0 %v727
    %v749 = vpop.f32.mrf.mxu0
    %v750 = vadd.f32 0.0, %v749
    %751 = vdwg.mxu0
    %s752 = scalar_lea.vmem %s10, 96
    %v753 = vld [vmem:[%s752] sm:$0xff]
    %v754 = vld [vmem:[%s752 + $0x8] sm:$0xff]
    %v755 = vld [vmem:[%s752 + $0x10] sm:$0xff]
    %v756 = vld [vmem:[%s752 + $0x18] sm:$0xff]
    %v757 = vld [vmem:[%s752 + $0x20] sm:$0xff]
    %v758 = vld [vmem:[%s752 + $0x28] sm:$0xff]
    %v759 = vld [vmem:[%s752 + $0x30] sm:$0xff]
    %v760 = vld [vmem:[%s752 + $0x38] sm:$0xff]
    %v761 = vld [vmem:[%s752 + $0x40] sm:$0xff]
    %v762 = vld [vmem:[%s752 + $0x48] sm:$0xff]
    %v763 = vld [vmem:[%s752 + $0x50] sm:$0xff]
    %v764 = vld [vmem:[%s752 + $0x58] sm:$0xff]
    %v766 = vsel %vm453, %v747, 0
    %v769 = vsel %vm453, %v750, 0
    %771 = vmatpush.msra.mxu0 0.0
    %772 = vmatpush.msra.mxu0 0.0
    %773 = vmatpush.msra.mxu0 0.0
    %774 = vmatpush.msra.mxu0 0.0
    %775 = vmatpush.msra.mxu0 %v764
    %776 = vmatpush.msra.mxu0 %v763
    %777 = vmatpush.msra.mxu0 %v762
    %778 = vmatpush.msra.mxu0 %v761
    %779 = vmatpush.msra.mxu0 %v760
    %780 = vmatpush.msra.mxu0 %v759
    %781 = vmatpush.msra.mxu0 %v758
    %782 = vmatpush.msra.mxu0 %v757
    %783 = vmatpush.msra.mxu0 %v756
    %784 = vmatpush.msra.mxu0 %v755
    %785 = vmatpush.msra.mxu0 %v754
    %786 = vmatpush.msra.mxu0 %v753
    %787 = vmatmul.f32.gmra.mxu0 %v766
    %v788 = vpop.f32.mrf.mxu0
    %v789 = vadd.f32 0.0, %v788
    %790 = vmatmul.f32.gmra.mxu0 %v769
    %v791 = vpop.f32.mrf.mxu0
    %v792 = vadd.f32 0.0, %v791
    %793 = vdwg.mxu0
    %v795 = vsel %vm453, %v703, 0
    %v798 = vsel %vm453, %v706, 0
    %800 = vmatpush.msra.mxu0 0.0
    %801 = vmatpush.msra.mxu0 0.0
    %802 = vmatpush.msra.mxu0 0.0
    %803 = vmatpush.msra.mxu0 0.0
    %804 = vmatpush.msra.mxu0 %v719
    %805 = vmatpush.msra.mxu0 %v718
    %806 = vmatpush.msra.mxu0 %v717
    %807 = vmatpush.msra.mxu0 %v716
    %808 = vmatpush.msra.mxu0 %v715
    %809 = vmatpush.msra.mxu0 %v714
    %810 = vmatpush.msra.mxu0 %v713
    %811 = vmatpush.msra.mxu0 %v712
    %812 = vmatpush.msra.mxu0 %v711
    %813 = vmatpush.msra.mxu0 %v710
    %814 = vmatpush.msra.mxu0 %v709
    %815 = vmatpush.msra.mxu0 %v708
    %816 = vmatmul.f32.gmra.mxu0 %v795
    %v817 = vpop.f32.mrf.mxu0
    %v818 = vadd.f32 %v789, %v817
    %819 = vmatmul.f32.gmra.mxu0 %v798
    %v820 = vpop.f32.mrf.mxu0
    %v821 = vadd.f32 %v792, %v820
    %822 = vdwg.mxu0
    %s823 = scalar_lea.vmem %s9, 32
    %v824 = vld [vmem:[%s823] sm:$0xff]
    %v825 = vld [vmem:[%s823 + $0x8] sm:$0x3]
    %v827 = vsel %vm68, %v824, 0
    %v830 = vsel %vm68, %v825, 0
    %832 = vmatpush.msra.mxu0 0.0
    %833 = vmatpush.msra.mxu0 0.0
    %834 = vmatpush.msra.mxu0 0.0
    %835 = vmatpush.msra.mxu0 0.0
    %836 = vmatpush.msra.mxu0 0.0
    %837 = vmatpush.msra.mxu0 0.0
    %838 = vmatpush.msra.mxu0 0.0
    %839 = vmatpush.msra.mxu0 0.0
    %840 = vmatpush.msra.mxu0 0.0
    %841 = vmatpush.msra.mxu0 0.0
    %842 = vmatpush.msra.mxu0 0.0
    %843 = vmatpush.msra.mxu0 0.0
    %844 = vmatpush.msra.mxu0 %v364
    %845 = vmatpush.msra.mxu0 %v363
    %846 = vmatpush.msra.mxu0 %v362
    %847 = vmatpush.msra.mxu0 %v361
    %848 = vmatmul.f32.gmra.mxu0 %v827
    %v849 = vpop.f32.mrf.mxu0
    %v850 = vadd.f32 0.0, %v849
    %851 = vmatmul.f32.gmra.mxu0 %v830
    %v852 = vpop.f32.mrf.mxu0
    %v853 = vadd.f32 0.0, %v852
    %854 = vdwg.mxu0
    %s855 = scalar_lea.vmem %s10, 192
    %v856 = vld [vmem:[%s855] sm:$0xff]
    %v857 = vld [vmem:[%s855 + $0x8] sm:$0xff]
    %v858 = vld [vmem:[%s855 + $0x10] sm:$0xff]
    %v859 = vld [vmem:[%s855 + $0x18] sm:$0xff]
    %v860 = vld [vmem:[%s855 + $0x20] sm:$0xff]
    %v861 = vld [vmem:[%s855 + $0x28] sm:$0xff]
    %v862 = vld [vmem:[%s855 + $0x30] sm:$0xff]
    %v863 = vld [vmem:[%s855 + $0x38] sm:$0xff]
    %v864 = vld [vmem:[%s855 + $0x40] sm:$0xff]
    %v865 = vld [vmem:[%s855 + $0x48] sm:$0xff]
    %v866 = vld [vmem:[%s855 + $0x50] sm:$0xff]
    %v867 = vld [vmem:[%s855 + $0x58] sm:$0xff]
    %v869 = vsel %vm453, %v850, 0
    %v872 = vsel %vm453, %v853, 0
    %874 = vmatpush.msra.mxu0 0.0
    %875 = vmatpush.msra.mxu0 0.0
    %876 = vmatpush.msra.mxu0 0.0
    %877 = vmatpush.msra.mxu0 0.0
    %878 = vmatpush.msra.mxu0 %v867
    %879 = vmatpush.msra.mxu0 %v866
    %880 = vmatpush.msra.mxu0 %v865
    %881 = vmatpush.msra.mxu0 %v864
    %882 = vmatpush.msra.mxu0 %v863
    %883 = vmatpush.msra.mxu0 %v862
    %884 = vmatpush.msra.mxu0 %v861
    %885 = vmatpush.msra.mxu0 %v860
    %886 = vmatpush.msra.mxu0 %v859
    %887 = vmatpush.msra.mxu0 %v858
    %888 = vmatpush.msra.mxu0 %v857
    %889 = vmatpush.msra.mxu0 %v856
    %890 = vmatmul.f32.gmra.mxu0 %v869
    %v891 = vpop.f32.mrf.mxu0
    %v892 = vadd.f32 0.0, %v891
    %893 = vmatmul.f32.gmra.mxu0 %v872
    %v894 = vpop.f32.mrf.mxu0
    %v895 = vadd.f32 0.0, %v894
    %896 = vdwg.mxu0
    %v897 = vadd.f32 %v818, %v892
    %v898 = vadd.f32 %v821, %v895
    %s899 = scalar_lea.vmem %s9, 48
    %v900 = vld [vmem:[%s899] sm:$0xff]
    %v901 = vld [vmem:[%s899 + $0x8] sm:$0x3]
    %v903 = vsel %vm68, %v900, 0
    %v906 = vsel %vm68, %v901, 0
    %908 = vmatpush.msra.mxu0 0.0
    %909 = vmatpush.msra.mxu0 0.0
    %910 = vmatpush.msra.mxu0 0.0
    %911 = vmatpush.msra.mxu0 0.0
    %912 = vmatpush.msra.mxu0 0.0
    %913 = vmatpush.msra.mxu0 0.0
    %914 = vmatpush.msra.mxu0 0.0
    %915 = vmatpush.msra.mxu0 0.0
    %916 = vmatpush.msra.mxu0 0.0
    %917 = vmatpush.msra.mxu0 0.0
    %918 = vmatpush.msra.mxu0 0.0
    %919 = vmatpush.msra.mxu0 0.0
    %920 = vmatpush.msra.mxu0 %v364
    %921 = vmatpush.msra.mxu0 %v363
    %922 = vmatpush.msra.mxu0 %v362
    %923 = vmatpush.msra.mxu0 %v361
    %924 = vmatmul.f32.gmra.mxu0 %v903
    %v925 = vpop.f32.mrf.mxu0
    %v926 = vadd.f32 0.0, %v925
    %927 = vmatmul.f32.gmra.mxu0 %v906
    %v928 = vpop.f32.mrf.mxu0
    %v929 = vadd.f32 0.0, %v928
    %930 = vdwg.mxu0
    %s931 = scalar_lea.vmem %s10, 288
    %v932 = vld [vmem:[%s931] sm:$0xff]
    %v933 = vld [vmem:[%s931 + $0x8] sm:$0xff]
    %v934 = vld [vmem:[%s931 + $0x10] sm:$0xff]
    %v935 = vld [vmem:[%s931 + $0x18] sm:$0xff]
    %v936 = vld [vmem:[%s931 + $0x20] sm:$0xff]
    %v937 = vld [vmem:[%s931 + $0x28] sm:$0xff]
    %v938 = vld [vmem:[%s931 + $0x30] sm:$0xff]
    %v939 = vld [vmem:[%s931 + $0x38] sm:$0xff]
    %v940 = vld [vmem:[%s931 + $0x40] sm:$0xff]
    %v941 = vld [vmem:[%s931 + $0x48] sm:$0xff]
    %v942 = vld [vmem:[%s931 + $0x50] sm:$0xff]
    %v943 = vld [vmem:[%s931 + $0x58] sm:$0xff]
    %v945 = vsel %vm453, %v926, 0
    %v948 = vsel %vm453, %v929, 0
    %950 = vmatpush.msra.mxu0 0.0
    %951 = vmatpush.msra.mxu0 0.0
    %952 = vmatpush.msra.mxu0 0.0
    %953 = vmatpush.msra.mxu0 0.0
    %954 = vmatpush.msra.mxu0 %v943
    %955 = vmatpush.msra.mxu0 %v942
    %956 = vmatpush.msra.mxu0 %v941
    %957 = vmatpush.msra.mxu0 %v940
    %958 = vmatpush.msra.mxu0 %v939
    %959 = vmatpush.msra.mxu0 %v938
    %960 = vmatpush.msra.mxu0 %v937
    %961 = vmatpush.msra.mxu0 %v936
    %962 = vmatpush.msra.mxu0 %v935
    %963 = vmatpush.msra.mxu0 %v934
    %964 = vmatpush.msra.mxu0 %v933
    %965 = vmatpush.msra.mxu0 %v932
    %966 = vmatmul.f32.gmra.mxu0 %v945
    %v967 = vpop.f32.mrf.mxu0
    %v968 = vadd.f32 0.0, %v967
    %969 = vmatmul.f32.gmra.mxu0 %v948
    %v970 = vpop.f32.mrf.mxu0
    %v971 = vadd.f32 0.0, %v970
    %972 = vdwg.mxu0
    %v973 = vadd.f32 %v897, %v968
    %v974 = vadd.f32 %v898, %v971
    %s975 = scalar_lea.vmem %s9, 64
    %v976 = vld [vmem:[%s975] sm:$0xff]
    %v977 = vld [vmem:[%s975 + $0x8] sm:$0x3]
    %v979 = vsel %vm68, %v976, 0
    %v982 = vsel %vm68, %v977, 0
    %984 = vmatpush.msra.mxu0 0.0
    %985 = vmatpush.msra.mxu0 0.0
    %986 = vmatpush.msra.mxu0 0.0
    %987 = vmatpush.msra.mxu0 0.0
    %988 = vmatpush.msra.mxu0 0.0
    %989 = vmatpush.msra.mxu0 0.0
    %990 = vmatpush.msra.mxu0 0.0
    %991 = vmatpush.msra.mxu0 0.0
    %992 = vmatpush.msra.mxu0 0.0
    %993 = vmatpush.msra.mxu0 0.0
    %994 = vmatpush.msra.mxu0 0.0
    %995 = vmatpush.msra.mxu0 0.0
    %996 = vmatpush.msra.mxu0 %v364
    %997 = vmatpush.msra.mxu0 %v363
    %998 = vmatpush.msra.mxu0 %v362
    %999 = vmatpush.msra.mxu0 %v361
    %1000 = vmatmul.f32.gmra.mxu0 %v979
    %v1001 = vpop.f32.mrf.mxu0
    %v1002 = vadd.f32 0.0, %v1001
    %1003 = vmatmul.f32.gmra.mxu0 %v982
    %v1004 = vpop.f32.mrf.mxu0
    %v1005 = vadd.f32 0.0, %v1004
    %1006 = vdwg.mxu0
    %s1007 = scalar_lea.vmem %s10, 384
    %v1008 = vld [vmem:[%s1007] sm:$0xff]
    %v1009 = vld [vmem:[%s1007 + $0x8] sm:$0xff]
    %v1010 = vld [vmem:[%s1007 + $0x10] sm:$0xff]
    %v1011 = vld [vmem:[%s1007 + $0x18] sm:$0xff]
    %v1012 = vld [vmem:[%s1007 + $0x20] sm:$0xff]
    %v1013 = vld [vmem:[%s1007 + $0x28] sm:$0xff]
    %v1014 = vld [vmem:[%s1007 + $0x30] sm:$0xff]
    %v1015 = vld [vmem:[%s1007 + $0x38] sm:$0xff]
    %v1016 = vld [vmem:[%s1007 + $0x40] sm:$0xff]
    %v1017 = vld [vmem:[%s1007 + $0x48] sm:$0xff]
    %v1018 = vld [vmem:[%s1007 + $0x50] sm:$0xff]
    %v1019 = vld [vmem:[%s1007 + $0x58] sm:$0xff]
    %v1021 = vsel %vm453, %v1002, 0
    %v1024 = vsel %vm453, %v1005, 0
    %1026 = vmatpush.msra.mxu0 0.0
    %1027 = vmatpush.msra.mxu0 0.0
    %1028 = vmatpush.msra.mxu0 0.0
    %1029 = vmatpush.msra.mxu0 0.0
    %1030 = vmatpush.msra.mxu0 %v1019
    %1031 = vmatpush.msra.mxu0 %v1018
    %1032 = vmatpush.msra.mxu0 %v1017
    %1033 = vmatpush.msra.mxu0 %v1016
    %1034 = vmatpush.msra.mxu0 %v1015
    %1035 = vmatpush.msra.mxu0 %v1014
    %1036 = vmatpush.msra.mxu0 %v1013
    %1037 = vmatpush.msra.mxu0 %v1012
    %1038 = vmatpush.msra.mxu0 %v1011
    %1039 = vmatpush.msra.mxu0 %v1010
    %1040 = vmatpush.msra.mxu0 %v1009
    %1041 = vmatpush.msra.mxu0 %v1008
    %1042 = vmatmul.f32.gmra.mxu0 %v1021
    %v1043 = vpop.f32.mrf.mxu0
    %v1044 = vadd.f32 0.0, %v1043
    %1045 = vmatmul.f32.gmra.mxu0 %v1024
    %v1046 = vpop.f32.mrf.mxu0
    %v1047 = vadd.f32 0.0, %v1046
    %1048 = vdwg.mxu0
    %v1049 = vadd.f32 %v973, %v1044
    %v1050 = vadd.f32 %v974, %v1047
    %v1051 = vld [vmem:[%s11] sm:$0x1]
    %v1053 = vperm.slane %v1051, 0
    %v1055 = vmul.f32 %v1049, %v1053
    %v1056 = vmul.f32 %v1050, %v1053
    %v1057 = vld [vmem:[%s12] sm:$0x1]
    %v1059 = vperm.slane %v1057, 0
    %v1061 = vadd.f32 %v1055, %v1059
    %v1062 = vadd.f32 %v1056, %v1059
    %v1063 = vmax.f32 %v1061, 0.0
    %v1064 = vmax.f32 %v1062, 0.0
    %v1066 = vsel %vm68, %v1063, 0
    %v1069 = vsel %vm68, %v1064, 0
    %1071 = vmatpush.msra.mxu0 0.0
    %1072 = vmatpush.msra.mxu0 0.0
    %1073 = vmatpush.msra.mxu0 0.0
    %1074 = vmatpush.msra.mxu0 0.0
    %1075 = vmatpush.msra.mxu0 0.0
    %1076 = vmatpush.msra.mxu0 0.0
    %1077 = vmatpush.msra.mxu0 0.0
    %1078 = vmatpush.msra.mxu0 0.0
    %1079 = vmatpush.msra.mxu0 0.0
    %1080 = vmatpush.msra.mxu0 0.0
    %1081 = vmatpush.msra.mxu0 0.0
    %1082 = vmatpush.msra.mxu0 0.0
    %1083 = vmatpush.msra.mxu0 %v605
    %1084 = vmatpush.msra.mxu0 %v604
    %1085 = vmatpush.msra.mxu0 %v603
    %1086 = vmatpush.msra.mxu0 %v602
    %1087 = vmatmul.f32.gmra.mxu0 %v1066
    %v1088 = vpop.f32.mrf.mxu0
    %v1089 = vadd.f32 0.0, %v1088
    %1090 = vmatmul.f32.gmra.mxu0 %v1069
    %v1091 = vpop.f32.mrf.mxu0
    %v1092 = vadd.f32 0.0, %v1091
    %1093 = vdwg.mxu0
    %v1094 = vsel %vm635, %v1089, 0.0
    %v1095 = vrot.slane %v1094, 4
    %v1096 = vadd.f32 %v1094, %v1095
    %v1097 = vrot.slane %v1096, 2
    %v1098 = vadd.f32 %v1096, %v1097
    %v1099 = vrot.slane %v1098, 1
    %v1100 = vadd.f32 %v1098, %v1099
    %v1101 = vadd.f32 %v643, %v1100
    %v1102 = vsel %vm635, %v1089, -inf
    %v1103 = vrot.slane %v1102, 4
    %v1104 = vmax.f32 %v1102, %v1103
    %v1105 = vrot.slane %v1104, 2
    %v1106 = vmax.f32 %v1104, %v1105
    %v1107 = vrot.slane %v1106, 1
    %v1108 = vmax.f32 %v1106, %v1107
    %v1109 = vmax.f32 %v650, %v1108
    %v1112 = vrot.slane %v1089, 5
    %v1113 = vrot.slane %v1092, 5
    %v1114 = vsel %vm653, %v1112, %v1113
    %v1116 = vsel %vm635, %v1114, 0.0
    %v1117 = vrot.slane %v1116, 4
    %v1118 = vadd.f32 %v1116, %v1117
    %v1119 = vrot.slane %v1118, 2
    %v1120 = vadd.f32 %v1118, %v1119
    %v1121 = vrot.slane %v1120, 1
    %v1122 = vadd.f32 %v1120, %v1121
    %v1123 = vadd.f32 %v665, %v1122
    %v1124 = vsel %vm666, %v1089, -inf
    %v1125 = vsel %vm668, %v1092, -inf
    %v1126 = vmax.f32 %v1124, %v1125
    %v1127 = vrot.slane %v1126, 4
    %v1128 = vmax.f32 %v1126, %v1127
    %v1129 = vrot.slane %v1128, 2
    %v1130 = vmax.f32 %v1128, %v1129
    %v1131 = vrot.slane %v1130, 1
    %v1132 = vmax.f32 %v1130, %v1131
    %v1133 = vmax.f32 %v676, %v1132
    %v1134 = vld [vmem:[%s13] sm:$0xff]
    %v1135 = vld [vmem:[%s13 + $0x8] sm:$0xf]
    %v1137 = vsel %vm68, %v1134, 0
    %v1140 = vsel %vm68, %v1135, 0
    %1142 = vmatpush.msra.mxu0 0.0
    %1143 = vmatpush.msra.mxu0 0.0
    %1144 = vmatpush.msra.mxu0 0.0
    %1145 = vmatpush.msra.mxu0 0.0
    %1146 = vmatpush.msra.mxu0 0.0
    %1147 = vmatpush.msra.mxu0 0.0
    %1148 = vmatpush.msra.mxu0 0.0
    %1149 = vmatpush.msra.mxu0 0.0
    %1150 = vmatpush.msra.mxu0 0.0
    %1151 = vmatpush.msra.mxu0 0.0
    %1152 = vmatpush.msra.mxu0 0.0
    %1153 = vmatpush.msra.mxu0 0.0
    %1154 = vmatpush.msra.mxu0 %v364
    %1155 = vmatpush.msra.mxu0 %v363
    %1156 = vmatpush.msra.mxu0 %v362
    %1157 = vmatpush.msra.mxu0 %v361
    %1158 = vmatmul.f32.gmra.mxu0 %v1137
    %v1159 = vpop.f32.mrf.mxu0
    %v1160 = vadd.f32 0.0, %v1159
    %1161 = vmatmul.f32.gmra.mxu0 %v1140
    %v1162 = vpop.f32.mrf.mxu0
    %v1163 = vadd.f32 0.0, %v1162
    %1164 = vdwg.mxu0
    %v1165 = vld [vmem:[%s14] sm:$0xff]
    %v1166 = vld [vmem:[%s14 + $0x8] sm:$0xff]
    %v1167 = vld [vmem:[%s14 + $0x10] sm:$0xff]
    %v1168 = vld [vmem:[%s14 + $0x18] sm:$0xff]
    %v1169 = vld [vmem:[%s14 + $0x20] sm:$0xff]
    %v1170 = vld [vmem:[%s14 + $0x28] sm:$0xff]
    %v1171 = vld [vmem:[%s14 + $0x30] sm:$0xff]
    %v1172 = vld [vmem:[%s14 + $0x38] sm:$0xff]
    %v1173 = vld [vmem:[%s14 + $0x40] sm:$0xff]
    %v1174 = vld [vmem:[%s14 + $0x48] sm:$0xff]
    %v1175 = vld [vmem:[%s14 + $0x50] sm:$0xff]
    %v1176 = vld [vmem:[%s14 + $0x58] sm:$0xff]
    %s1177 = scalar_lea.vmem %s13, 16
    %v1178 = vld [vmem:[%s1177] sm:$0xff]
    %v1179 = vld [vmem:[%s1177 + $0x8] sm:$0xf]
    %v1181 = vsel %vm68, %v1178, 0
    %v1184 = vsel %vm68, %v1179, 0
    %1186 = vmatpush.msra.mxu0 0.0
    %1187 = vmatpush.msra.mxu0 0.0
    %1188 = vmatpush.msra.mxu0 0.0
    %1189 = vmatpush.msra.mxu0 0.0
    %1190 = vmatpush.msra.mxu0 0.0
    %1191 = vmatpush.msra.mxu0 0.0
    %1192 = vmatpush.msra.mxu0 0.0
    %1193 = vmatpush.msra.mxu0 0.0
    %1194 = vmatpush.msra.mxu0 0.0
    %1195 = vmatpush.msra.mxu0 0.0
    %1196 = vmatpush.msra.mxu0 0.0
    %1197 = vmatpush.msra.mxu0 0.0
    %1198 = vmatpush.msra.mxu0 %v364
    %1199 = vmatpush.msra.mxu0 %v363
    %1200 = vmatpush.msra.mxu0 %v362
    %1201 = vmatpush.msra.mxu0 %v361
    %1202 = vmatmul.f32.gmra.mxu0 %v1181
    %v1203 = vpop.f32.mrf.mxu0
    %v1204 = vadd.f32 0.0, %v1203
    %1205 = vmatmul.f32.gmra.mxu0 %v1184
    %v1206 = vpop.f32.mrf.mxu0
    %v1207 = vadd.f32 0.0, %v1206
    %1208 = vdwg.mxu0
    %s1209 = scalar_lea.vmem %s14, 96
    %v1210 = vld [vmem:[%s1209] sm:$0xff]
    %v1211 = vld [vmem:[%s1209 + $0x8] sm:$0xff]
    %v1212 = vld [vmem:[%s1209 + $0x10] sm:$0xff]
    %v1213 = vld [vmem:[%s1209 + $0x18] sm:$0xff]
    %v1214 = vld [vmem:[%s1209 + $0x20] sm:$0xff]
    %v1215 = vld [vmem:[%s1209 + $0x28] sm:$0xff]
    %v1216 = vld [vmem:[%s1209 + $0x30] sm:$0xff]
    %v1217 = vld [vmem:[%s1209 + $0x38] sm:$0xff]
    %v1218 = vld [vmem:[%s1209 + $0x40] sm:$0xff]
    %v1219 = vld [vmem:[%s1209 + $0x48] sm:$0xff]
    %v1220 = vld [vmem:[%s1209 + $0x50] sm:$0xff]
    %v1221 = vld [vmem:[%s1209 + $0x58] sm:$0xff]
    %v1223 = vsel %vm453, %v1204, 0
    %v1226 = vsel %vm453, %v1207, 0
    %1228 = vmatpush.msra.mxu0 0.0
    %1229 = vmatpush.msra.mxu0 0.0
    %1230 = vmatpush.msra.mxu0 0.0
    %1231 = vmatpush.msra.mxu0 0.0
    %1232 = vmatpush.msra.mxu0 %v1221
    %1233 = vmatpush.msra.mxu0 %v1220
    %1234 = vmatpush.msra.mxu0 %v1219
    %1235 = vmatpush.msra.mxu0 %v1218
    %1236 = vmatpush.msra.mxu0 %v1217
    %1237 = vmatpush.msra.mxu0 %v1216
    %1238 = vmatpush.msra.mxu0 %v1215
    %1239 = vmatpush.msra.mxu0 %v1214
    %1240 = vmatpush.msra.mxu0 %v1213
    %1241 = vmatpush.msra.mxu0 %v1212
    %1242 = vmatpush.msra.mxu0 %v1211
    %1243 = vmatpush.msra.mxu0 %v1210
    %1244 = vmatmul.f32.gmra.mxu0 %v1223
    %v1245 = vpop.f32.mrf.mxu0
    %v1246 = vadd.f32 0.0, %v1245
    %1247 = vmatmul.f32.gmra.mxu0 %v1226
    %v1248 = vpop.f32.mrf.mxu0
    %v1249 = vadd.f32 0.0, %v1248
    %1250 = vdwg.mxu0
    %v1252 = vsel %vm453, %v1160, 0
    %v1255 = vsel %vm453, %v1163, 0
    %1257 = vmatpush.msra.mxu0 0.0
    %1258 = vmatpush.msra.mxu0 0.0
    %1259 = vmatpush.msra.mxu0 0.0
    %1260 = vmatpush.msra.mxu0 0.0
    %1261 = vmatpush.msra.mxu0 %v1176
    %1262 = vmatpush.msra.mxu0 %v1175
    %1263 = vmatpush.msra.mxu0 %v1174
    %1264 = vmatpush.msra.mxu0 %v1173
    %1265 = vmatpush.msra.mxu0 %v1172
    %1266 = vmatpush.msra.mxu0 %v1171
    %1267 = vmatpush.msra.mxu0 %v1170
    %1268 = vmatpush.msra.mxu0 %v1169
    %1269 = vmatpush.msra.mxu0 %v1168
    %1270 = vmatpush.msra.mxu0 %v1167
    %1271 = vmatpush.msra.mxu0 %v1166
    %1272 = vmatpush.msra.mxu0 %v1165
    %1273 = vmatmul.f32.gmra.mxu0 %v1252
    %v1274 = vpop.f32.mrf.mxu0
    %v1275 = vadd.f32 %v1246, %v1274
    %1276 = vmatmul.f32.gmra.mxu0 %v1255
    %v1277 = vpop.f32.mrf.mxu0
    %v1278 = vadd.f32 %v1249, %v1277
    %1279 = vdwg.mxu0
    %s1280 = scalar_lea.vmem %s13, 32
    %v1281 = vld [vmem:[%s1280] sm:$0xff]
    %v1282 = vld [vmem:[%s1280 + $0x8] sm:$0xf]
    %v1284 = vsel %vm68, %v1281, 0
    %v1287 = vsel %vm68, %v1282, 0
    %1289 = vmatpush.msra.mxu0 0.0
    %1290 = vmatpush.msra.mxu0 0.0
    %1291 = vmatpush.msra.mxu0 0.0
    %1292 = vmatpush.msra.mxu0 0.0
    %1293 = vmatpush.msra.mxu0 0.0
    %1294 = vmatpush.msra.mxu0 0.0
    %1295 = vmatpush.msra.mxu0 0.0
    %1296 = vmatpush.msra.mxu0 0.0
    %1297 = vmatpush.msra.mxu0 0.0
    %1298 = vmatpush.msra.mxu0 0.0
    %1299 = vmatpush.msra.mxu0 0.0
    %1300 = vmatpush.msra.mxu0 0.0
    %1301 = vmatpush.msra.mxu0 %v364
    %1302 = vmatpush.msra.mxu0 %v363
    %1303 = vmatpush.msra.mxu0 %v362
    %1304 = vmatpush.msra.mxu0 %v361
    %1305 = vmatmul.f32.gmra.mxu0 %v1284
    %v1306 = vpop.f32.mrf.mxu0
    %v1307 = vadd.f32 0.0, %v1306
    %1308 = vmatmul.f32.gmra.mxu0 %v1287
    %v1309 = vpop.f32.mrf.mxu0
    %v1310 = vadd.f32 0.0, %v1309
    %1311 = vdwg.mxu0
    %s1312 = scalar_lea.vmem %s14, 192
    %v1313 = vld [vmem:[%s1312] sm:$0xff]
    %v1314 = vld [vmem:[%s1312 + $0x8] sm:$0xff]
    %v1315 = vld [vmem:[%s1312 + $0x10] sm:$0xff]
    %v1316 = vld [vmem:[%s1312 + $0x18] sm:$0xff]
    %v1317 = vld [vmem:[%s1312 + $0x20] sm:$0xff]
    %v1318 = vld [vmem:[%s1312 + $0x28] sm:$0xff]
    %v1319 = vld [vmem:[%s1312 + $0x30] sm:$0xff]
    %v1320 = vld [vmem:[%s1312 + $0x38] sm:$0xff]
    %v1321 = vld [vmem:[%s1312 + $0x40] sm:$0xff]
    %v1322 = vld [vmem:[%s1312 + $0x48] sm:$0xff]
    %v1323 = vld [vmem:[%s1312 + $0x50] sm:$0xff]
    %v1324 = vld [vmem:[%s1312 + $0x58] sm:$0xff]
    %v1326 = vsel %vm453, %v1307, 0
    %v1329 = vsel %vm453, %v1310, 0
    %1331 = vmatpush.msra.mxu0 0.0
    %1332 = vmatpush.msra.mxu0 0.0
    %1333 = vmatpush.msra.mxu0 0.0
    %1334 = vmatpush.msra.mxu0 0.0
    %1335 = vmatpush.msra.mxu0 %v1324
    %1336 = vmatpush.msra.mxu0 %v1323
    %1337 = vmatpush.msra.mxu0 %v1322
    %1338 = vmatpush.msra.mxu0 %v1321
    %1339 = vmatpush.msra.mxu0 %v1320
    %1340 = vmatpush.msra.mxu0 %v1319
    %1341 = vmatpush.msra.mxu0 %v1318
    %1342 = vmatpush.msra.mxu0 %v1317
    %1343 = vmatpush.msra.mxu0 %v1316
    %1344 = vmatpush.msra.mxu0 %v1315
    %1345 = vmatpush.msra.mxu0 %v1314
    %1346 = vmatpush.msra.mxu0 %v1313
    %1347 = vmatmul.f32.gmra.mxu0 %v1326
    %v1348 = vpop.f32.mrf.mxu0
    %v1349 = vadd.f32 0.0, %v1348
    %1350 = vmatmul.f32.gmra.mxu0 %v1329
    %v1351 = vpop.f32.mrf.mxu0
    %v1352 = vadd.f32 0.0, %v1351
    %1353 = vdwg.mxu0
    %v1354 = vadd.f32 %v1275, %v1349
    %v1355 = vadd.f32 %v1278, %v1352
    %s1356 = scalar_lea.vmem %s13, 48
    %v1357 = vld [vmem:[%s1356] sm:$0xff]
    %v1358 = vld [vmem:[%s1356 + $0x8] sm:$0xf]
    %v1360 = vsel %vm68, %v1357, 0
    %v1363 = vsel %vm68, %v1358, 0
    %1365 = vmatpush.msra.mxu0 0.0
    %1366 = vmatpush.msra.mxu0 0.0
    %1367 = vmatpush.msra.mxu0 0.0
    %1368 = vmatpush.msra.mxu0 0.0
    %1369 = vmatpush.msra.mxu0 0.0
    %1370 = vmatpush.msra.mxu0 0.0
    %1371 = vmatpush.msra.mxu0 0.0
    %1372 = vmatpush.msra.mxu0 0.0
    %1373 = vmatpush.msra.mxu0 0.0
    %1374 = vmatpush.msra.mxu0 0.0
    %1375 = vmatpush.msra.mxu0 0.0
    %1376 = vmatpush.msra.mxu0 0.0
    %1377 = vmatpush.msra.mxu0 %v364
    %1378 = vmatpush.msra.mxu0 %v363
    %1379 = vmatpush.msra.mxu0 %v362
    %1380 = vmatpush.msra.mxu0 %v361
    %1381 = vmatmul.f32.gmra.mxu0 %v1360
    %v1382 = vpop.f32.mrf.mxu0
    %v1383 = vadd.f32 0.0, %v1382
    %1384 = vmatmul.f32.gmra.mxu0 %v1363
    %v1385 = vpop.f32.mrf.mxu0
    %v1386 = vadd.f32 0.0, %v1385
    %1387 = vdwg.mxu0
    %s1388 = scalar_lea.vmem %s14, 288
    %v1389 = vld [vmem:[%s1388] sm:$0xff]
    %v1390 = vld [vmem:[%s1388 + $0x8] sm:$0xff]
    %v1391 = vld [vmem:[%s1388 + $0x10] sm:$0xff]
    %v1392 = vld [vmem:[%s1388 + $0x18] sm:$0xff]
    %v1393 = vld [vmem:[%s1388 + $0x20] sm:$0xff]
    %v1394 = vld [vmem:[%s1388 + $0x28] sm:$0xff]
    %v1395 = vld [vmem:[%s1388 + $0x30] sm:$0xff]
    %v1396 = vld [vmem:[%s1388 + $0x38] sm:$0xff]
    %v1397 = vld [vmem:[%s1388 + $0x40] sm:$0xff]
    %v1398 = vld [vmem:[%s1388 + $0x48] sm:$0xff]
    %v1399 = vld [vmem:[%s1388 + $0x50] sm:$0xff]
    %v1400 = vld [vmem:[%s1388 + $0x58] sm:$0xff]
    %v1402 = vsel %vm453, %v1383, 0
    %v1405 = vsel %vm453, %v1386, 0
    %1407 = vmatpush.msra.mxu0 0.0
    %1408 = vmatpush.msra.mxu0 0.0
    %1409 = vmatpush.msra.mxu0 0.0
    %1410 = vmatpush.msra.mxu0 0.0
    %1411 = vmatpush.msra.mxu0 %v1400
    %1412 = vmatpush.msra.mxu0 %v1399
    %1413 = vmatpush.msra.mxu0 %v1398
    %1414 = vmatpush.msra.mxu0 %v1397
    %1415 = vmatpush.msra.mxu0 %v1396
    %1416 = vmatpush.msra.mxu0 %v1395
    %1417 = vmatpush.msra.mxu0 %v1394
    %1418 = vmatpush.msra.mxu0 %v1393
    %1419 = vmatpush.msra.mxu0 %v1392
    %1420 = vmatpush.msra.mxu0 %v1391
    %1421 = vmatpush.msra.mxu0 %v1390
    %1422 = vmatpush.msra.mxu0 %v1389
    %1423 = vmatmul.f32.gmra.mxu0 %v1402
    %v1424 = vpop.f32.mrf.mxu0
    %v1425 = vadd.f32 0.0, %v1424
    %1426 = vmatmul.f32.gmra.mxu0 %v1405
    %v1427 = vpop.f32.mrf.mxu0
    %v1428 = vadd.f32 0.0, %v1427
    %1429 = vdwg.mxu0
    %v1430 = vadd.f32 %v1354, %v1425
    %v1431 = vadd.f32 %v1355, %v1428
    %s1432 = scalar_lea.vmem %s13, 64
    %v1433 = vld [vmem:[%s1432] sm:$0xff]
    %v1434 = vld [vmem:[%s1432 + $0x8] sm:$0xf]
    %v1436 = vsel %vm68, %v1433, 0
    %v1439 = vsel %vm68, %v1434, 0
    %1441 = vmatpush.msra.mxu0 0.0
    %1442 = vmatpush.msra.mxu0 0.0
    %1443 = vmatpush.msra.mxu0 0.0
    %1444 = vmatpush.msra.mxu0 0.0
    %1445 = vmatpush.msra.mxu0 0.0
    %1446 = vmatpush.msra.mxu0 0.0
    %1447 = vmatpush.msra.mxu0 0.0
    %1448 = vmatpush.msra.mxu0 0.0
    %1449 = vmatpush.msra.mxu0 0.0
    %1450 = vmatpush.msra.mxu0 0.0
    %1451 = vmatpush.msra.mxu0 0.0
    %1452 = vmatpush.msra.mxu0 0.0
    %1453 = vmatpush.msra.mxu0 %v364
    %1454 = vmatpush.msra.mxu0 %v363
    %1455 = vmatpush.msra.mxu0 %v362
    %1456 = vmatpush.msra.mxu0 %v361
    %1457 = vmatmul.f32.gmra.mxu0 %v1436
    %v1458 = vpop.f32.mrf.mxu0
    %v1459 = vadd.f32 0.0, %v1458
    %1460 = vmatmul.f32.gmra.mxu0 %v1439
    %v1461 = vpop.f32.mrf.mxu0
    %v1462 = vadd.f32 0.0, %v1461
    %1463 = vdwg.mxu0
    %s1464 = scalar_lea.vmem %s14, 384
    %v1465 = vld [vmem:[%s1464] sm:$0xff]
    %v1466 = vld [vmem:[%s1464 + $0x8] sm:$0xff]
    %v1467 = vld [vmem:[%s1464 + $0x10] sm:$0xff]
    %v1468 = vld [vmem:[%s1464 + $0x18] sm:$0xff]
    %v1469 = vld [vmem:[%s1464 + $0x20] sm:$0xff]
    %v1470 = vld [vmem:[%s1464 + $0x28] sm:$0xff]
    %v1471 = vld [vmem:[%s1464 + $0x30] sm:$0xff]
    %v1472 = vld [vmem:[%s1464 + $0x38] sm:$0xff]
    %v1473 = vld [vmem:[%s1464 + $0x40] sm:$0xff]
    %v1474 = vld [vmem:[%s1464 + $0x48] sm:$0xff]
    %v1475 = vld [vmem:[%s1464 + $0x50] sm:$0xff]
    %v1476 = vld [vmem:[%s1464 + $0x58] sm:$0xff]
    %v1478 = vsel %vm453, %v1459, 0
    %v1481 = vsel %vm453, %v1462, 0
    %1483 = vmatpush.msra.mxu0 0.0
    %1484 = vmatpush.msra.mxu0 0.0
    %1485 = vmatpush.msra.mxu0 0.0
    %1486 = vmatpush.msra.mxu0 0.0
    %1487 = vmatpush.msra.mxu0 %v1476
    %1488 = vmatpush.msra.mxu0 %v1475
    %1489 = vmatpush.msra.mxu0 %v1474
    %1490 = vmatpush.msra.mxu0 %v1473
    %1491 = vmatpush.msra.mxu0 %v1472
    %1492 = vmatpush.msra.mxu0 %v1471
    %1493 = vmatpush.msra.mxu0 %v1470
    %1494 = vmatpush.msra.mxu0 %v1469
    %1495 = vmatpush.msra.mxu0 %v1468
    %1496 = vmatpush.msra.mxu0 %v1467
    %1497 = vmatpush.msra.mxu0 %v1466
    %1498 = vmatpush.msra.mxu0 %v1465
    %1499 = vmatmul.f32.gmra.mxu0 %v1478
    %v1500 = vpop.f32.mrf.mxu0
    %v1501 = vadd.f32 0.0, %v1500
    %1502 = vmatmul.f32.gmra.mxu0 %v1481
    %v1503 = vpop.f32.mrf.mxu0
    %v1504 = vadd.f32 0.0, %v1503
    %1505 = vdwg.mxu0
    %v1506 = vadd.f32 %v1430, %v1501
    %v1507 = vadd.f32 %v1431, %v1504
    %s1508 = scalar_lea.vmem %s13, 80
    %v1509 = vld [vmem:[%s1508] sm:$0xff]
    %v1510 = vld [vmem:[%s1508 + $0x8] sm:$0xf]
    %v1512 = vsel %vm68, %v1509, 0
    %v1515 = vsel %vm68, %v1510, 0
    %1517 = vmatpush.msra.mxu0 0.0
    %1518 = vmatpush.msra.mxu0 0.0
    %1519 = vmatpush.msra.mxu0 0.0
    %1520 = vmatpush.msra.mxu0 0.0
    %1521 = vmatpush.msra.mxu0 0.0
    %1522 = vmatpush.msra.mxu0 0.0
    %1523 = vmatpush.msra.mxu0 0.0
    %1524 = vmatpush.msra.mxu0 0.0
    %1525 = vmatpush.msra.mxu0 0.0
    %1526 = vmatpush.msra.mxu0 0.0
    %1527 = vmatpush.msra.mxu0 0.0
    %1528 = vmatpush.msra.mxu0 0.0
    %1529 = vmatpush.msra.mxu0 %v364
    %1530 = vmatpush.msra.mxu0 %v363
    %1531 = vmatpush.msra.mxu0 %v362
    %1532 = vmatpush.msra.mxu0 %v361
    %1533 = vmatmul.f32.gmra.mxu0 %v1512
    %v1534 = vpop.f32.mrf.mxu0
    %v1535 = vadd.f32 0.0, %v1534
    %1536 = vmatmul.f32.gmra.mxu0 %v1515
    %v1537 = vpop.f32.mrf.mxu0
    %v1538 = vadd.f32 0.0, %v1537
    %1539 = vdwg.mxu0
    %s1540 = scalar_lea.vmem %s14, 480
    %v1541 = vld [vmem:[%s1540] sm:$0xff]
    %v1542 = vld [vmem:[%s1540 + $0x8] sm:$0xff]
    %v1543 = vld [vmem:[%s1540 + $0x10] sm:$0xff]
    %v1544 = vld [vmem:[%s1540 + $0x18] sm:$0xff]
    %v1545 = vld [vmem:[%s1540 + $0x20] sm:$0xff]
    %v1546 = vld [vmem:[%s1540 + $0x28] sm:$0xff]
    %v1547 = vld [vmem:[%s1540 + $0x30] sm:$0xff]
    %v1548 = vld [vmem:[%s1540 + $0x38] sm:$0xff]
    %v1549 = vld [vmem:[%s1540 + $0x40] sm:$0xff]
    %v1550 = vld [vmem:[%s1540 + $0x48] sm:$0xff]
    %v1551 = vld [vmem:[%s1540 + $0x50] sm:$0xff]
    %v1552 = vld [vmem:[%s1540 + $0x58] sm:$0xff]
    %v1554 = vsel %vm453, %v1535, 0
    %v1557 = vsel %vm453, %v1538, 0
    %1559 = vmatpush.msra.mxu0 0.0
    %1560 = vmatpush.msra.mxu0 0.0
    %1561 = vmatpush.msra.mxu0 0.0
    %1562 = vmatpush.msra.mxu0 0.0
    %1563 = vmatpush.msra.mxu0 %v1552
    %1564 = vmatpush.msra.mxu0 %v1551
    %1565 = vmatpush.msra.mxu0 %v1550
    %1566 = vmatpush.msra.mxu0 %v1549
    %1567 = vmatpush.msra.mxu0 %v1548
    %1568 = vmatpush.msra.mxu0 %v1547
    %1569 = vmatpush.msra.mxu0 %v1546
    %1570 = vmatpush.msra.mxu0 %v1545
    %1571 = vmatpush.msra.mxu0 %v1544
    %1572 = vmatpush.msra.mxu0 %v1543
    %1573 = vmatpush.msra.mxu0 %v1542
    %1574 = vmatpush.msra.mxu0 %v1541
    %1575 = vmatmul.f32.gmra.mxu0 %v1554
    %v1576 = vpop.f32.mrf.mxu0
    %v1577 = vadd.f32 0.0, %v1576
    %1578 = vmatmul.f32.gmra.mxu0 %v1557
    %v1579 = vpop.f32.mrf.mxu0
    %v1580 = vadd.f32 0.0, %v1579
    %1581 = vdwg.mxu0
    %v1582 = vadd.f32 %v1506, %v1577
    %v1583 = vadd.f32 %v1507, %v1580
    %s1584 = scalar_lea.vmem %s13, 96
    %v1585 = vld [vmem:[%s1584] sm:$0xff]
    %v1586 = vld [vmem:[%s1584 + $0x8] sm:$0xf]
    %v1588 = vsel %vm68, %v1585, 0
    %v1591 = vsel %vm68, %v1586, 0
    %1593 = vmatpush.msra.mxu0 0.0
    %1594 = vmatpush.msra.mxu0 0.0
    %1595 = vmatpush.msra.mxu0 0.0
    %1596 = vmatpush.msra.mxu0 0.0
    %1597 = vmatpush.msra.mxu0 0.0
    %1598 = vmatpush.msra.mxu0 0.0
    %1599 = vmatpush.msra.mxu0 0.0
    %1600 = vmatpush.msra.mxu0 0.0
    %1601 = vmatpush.msra.mxu0 0.0
    %1602 = vmatpush.msra.mxu0 0.0
    %1603 = vmatpush.msra.mxu0 0.0
    %1604 = vmatpush.msra.mxu0 0.0
    %1605 = vmatpush.msra.mxu0 %v364
    %1606 = vmatpush.msra.mxu0 %v363
    %1607 = vmatpush.msra.mxu0 %v362
    %1608 = vmatpush.msra.mxu0 %v361
    %1609 = vmatmul.f32.gmra.mxu0 %v1588
    %v1610 = vpop.f32.mrf.mxu0
    %v1611 = vadd.f32 0.0, %v1610
    %1612 = vmatmul.f32.gmra.mxu0 %v1591
    %v1613 = vpop.f32.mrf.mxu0
    %v1614 = vadd.f32 0.0, %v1613
    %1615 = vdwg.mxu0
    %s1616 = scalar_lea.vmem %s14, 576
    %v1617 = vld [vmem:[%s1616] sm:$0xff]
    %v1618 = vld [vmem:[%s1616 + $0x8] sm:$0xff]
    %v1619 = vld [vmem:[%s1616 + $0x10] sm:$0xff]
    %v1620 = vld [vmem:[%s1616 + $0x18] sm:$0xff]
    %v1621 = vld [vmem:[%s1616 + $0x20] sm:$0xff]
    %v1622 = vld [vmem:[%s1616 + $0x28] sm:$0xff]
    %v1623 = vld [vmem:[%s1616 + $0x30] sm:$0xff]
    %v1624 = vld [vmem:[%s1616 + $0x38] sm:$0xff]
    %v1625 = vld [vmem:[%s1616 + $0x40] sm:$0xff]
    %v1626 = vld [vmem:[%s1616 + $0x48] sm:$0xff]
    %v1627 = vld [vmem:[%s1616 + $0x50] sm:$0xff]
    %v1628 = vld [vmem:[%s1616 + $0x58] sm:$0xff]
    %v1630 = vsel %vm453, %v1611, 0
    %v1633 = vsel %vm453, %v1614, 0
    %1635 = vmatpush.msra.mxu0 0.0
    %1636 = vmatpush.msra.mxu0 0.0
    %1637 = vmatpush.msra.mxu0 0.0
    %1638 = vmatpush.msra.mxu0 0.0
    %1639 = vmatpush.msra.mxu0 %v1628
    %1640 = vmatpush.msra.mxu0 %v1627
    %1641 = vmatpush.msra.mxu0 %v1626
    %1642 = vmatpush.msra.mxu0 %v1625
    %1643 = vmatpush.msra.mxu0 %v1624
    %1644 = vmatpush.msra.mxu0 %v1623
    %1645 = vmatpush.msra.mxu0 %v1622
    %1646 = vmatpush.msra.mxu0 %v1621
    %1647 = vmatpush.msra.mxu0 %v1620
    %1648 = vmatpush.msra.mxu0 %v1619
    %1649 = vmatpush.msra.mxu0 %v1618
    %1650 = vmatpush.msra.mxu0 %v1617
    %1651 = vmatmul.f32.gmra.mxu0 %v1630
    %v1652 = vpop.f32.mrf.mxu0
    %v1653 = vadd.f32 0.0, %v1652
    %1654 = vmatmul.f32.gmra.mxu0 %v1633
    %v1655 = vpop.f32.mrf.mxu0
    %v1656 = vadd.f32 0.0, %v1655
    %1657 = vdwg.mxu0
    %v1658 = vadd.f32 %v1582, %v1653
    %v1659 = vadd.f32 %v1583, %v1656
    %v1660 = vld [vmem:[%s15] sm:$0x1]
    %v1662 = vperm.slane %v1660, 0
    %v1664 = vmul.f32 %v1658, %v1662
    %v1665 = vmul.f32 %v1659, %v1662
    %v1666 = vld [vmem:[%s16] sm:$0x1]
    %v1668 = vperm.slane %v1666, 0
    %v1670 = vadd.f32 %v1664, %v1668
    %v1671 = vadd.f32 %v1665, %v1668
    %v1672 = vmax.f32 %v1670, 0.0
    %v1673 = vmax.f32 %v1671, 0.0
    %v1675 = vsel %vm68, %v1672, 0
    %v1678 = vsel %vm68, %v1673, 0
    %1680 = vmatpush.msra.mxu0 0.0
    %1681 = vmatpush.msra.mxu0 0.0
    %1682 = vmatpush.msra.mxu0 0.0
    %1683 = vmatpush.msra.mxu0 0.0
    %1684 = vmatpush.msra.mxu0 0.0
    %1685 = vmatpush.msra.mxu0 0.0
    %1686 = vmatpush.msra.mxu0 0.0
    %1687 = vmatpush.msra.mxu0 0.0
    %1688 = vmatpush.msra.mxu0 0.0
    %1689 = vmatpush.msra.mxu0 0.0
    %1690 = vmatpush.msra.mxu0 0.0
    %1691 = vmatpush.msra.mxu0 0.0
    %1692 = vmatpush.msra.mxu0 %v605
    %1693 = vmatpush.msra.mxu0 %v604
    %1694 = vmatpush.msra.mxu0 %v603
    %1695 = vmatpush.msra.mxu0 %v602
    %1696 = vmatmul.f32.gmra.mxu0 %v1675
    %v1697 = vpop.f32.mrf.mxu0
    %v1698 = vadd.f32 0.0, %v1697
    %1699 = vmatmul.f32.gmra.mxu0 %v1678
    %v1700 = vpop.f32.mrf.mxu0
    %v1701 = vadd.f32 0.0, %v1700
    %1702 = vdwg.mxu0
    %vm1703 = vcmask 1045504
    %v1704 = vsel %vm1703, %v1698, 0.0
    %v1705 = vrot.slane %v1704, 4
    %v1706 = vadd.f32 %v1704, %v1705
    %v1707 = vrot.slane %v1706, 2
    %v1708 = vadd.f32 %v1706, %v1707
    %v1709 = vrot.slane %v1708, 1
    %v1710 = vadd.f32 %v1708, %v1709
    %v1711 = vadd.f32 %v1101, %v1710
    %v1712 = vsel %vm1703, %v1698, -inf
    %v1713 = vrot.slane %v1712, 4
    %v1714 = vmax.f32 %v1712, %v1713
    %v1715 = vrot.slane %v1714, 2
    %v1716 = vmax.f32 %v1714, %v1715
    %v1717 = vrot.slane %v1716, 1
    %v1718 = vmax.f32 %v1716, %v1717
    %v1719 = vmax.f32 %v1109, %v1718
    %v1722 = vrot.slane %v1698, 6
    %v1723 = vrot.slane %v1701, 6
    %v1724 = vsel %vm668, %v1722, %v1723
    %v1726 = vsel %vm1703, %v1724, 0.0
    %v1727 = vrot.slane %v1726, 4
    %v1728 = vadd.f32 %v1726, %v1727
    %v1729 = vrot.slane %v1728, 2
    %v1730 = vadd.f32 %v1728, %v1729
    %v1731 = vrot.slane %v1730, 1
    %v1732 = vadd.f32 %v1730, %v1731
    %v1733 = vadd.f32 %v1123, %v1732
    %vm1734 = vcmask 1047558
    %v1735 = vsel %vm1734, %v1698, -inf
    %v1736 = vsel %vm172, %v1701, -inf
    %v1737 = vmax.f32 %v1735, %v1736
    %v1738 = vrot.slane %v1737, 4
    %v1739 = vmax.f32 %v1737, %v1738
    %v1740 = vrot.slane %v1739, 2
    %v1741 = vmax.f32 %v1739, %v1740
    %v1742 = vrot.slane %v1741, 1
    %v1743 = vmax.f32 %v1741, %v1742
    %v1744 = vmax.f32 %v1133, %v1743
    %vm1745 = vcmask 1040384
    %v1746 = vsel %vm1745, %v1711, %v1733
    %v1747 = vmul.f32 %v1746, 0.0625
    %v1748 = vsel %vm1745, %v1719, %v1744
    %v1749 = vadd.f32 %v1747, %v1748
    %1750 = vst [vmem:[#allocation2] sm:$0x3] %v1749
    // Predicated region
    $region74: #{tpu_custom_call.1} parent=1 // pred_check
      _
    $region75: #{tpu_custom_call.1} parent=1 // pred_check_branch
      %1752 = sbr.rel (0) target = $region77
    $region76: #{tpu_custom_call.1} parent=1 // pred_region
      %1754 = vsyncadd [#allocation3], 0
      %s1756 = sshll.u32 [#allocation2], 4
      %s1757 = int_to_ptr.vmem [resolvable:$true] %s1756
      %s1758 = sshll.u32 %s18, 4
      %s1759 = int_to_ptr.hbm [resolvable:$true] %s1758
      %1761 = dma.vmem_to_hbm [thread:$0]  %s1757, 32, %s1759, [#allocation3]
    $region77: #{tpu_custom_call.1} parent=1 // pred_fallthru
      _
    // Predicated region
    $region78: #{tpu_custom_call.1} parent=1 // pred_check
      _
    $region79: #{tpu_custom_call.1} parent=1 // pred_check_branch
      %1763 = sbr.rel (0) target = $region81
    $region80: #{tpu_custom_call.1} parent=1 // pred_region
      %1765 = dma.done [#allocation3], 32
    $region81: #{tpu_custom_call.1} parent=1 // pred_fallthru
      _
    %1766 = vsyncpa [#allocation3], 1

</llo_original>
